<compile_context>
chip_gen: v5e
topology: v5e:2x2
jax: 0.10.0
libtpu: 0.0.40
codegen_flags: <defaults>
</compile_context>

<pallas_src>
import math

import jax
import jax.numpy as jnp
import numpy as np
from jax.experimental import pallas as pl
from jax.experimental.pallas import tpu as pltpu

jax.config.update("jax_default_matmul_precision", "highest")

D_MODEL = 32          # fixed by conv2 out_channels in the PyTorch module
NUM_HEADS = 8         # PyramidAttention hard-codes 8 heads
SCALES = (1, 2, 4)
HIGHEST = jax.lax.Precision.HIGHEST


# --------------------------- kernel 1: CNN frontend ---------------------------
def _make_cnn_kernel(L, C1):
    L2 = L // 2          # length after first max-pool
    L4 = L2 // 2         # length after second max-pool (= attention seq_len)

    def kernel(x_ref, w1_ref, b1_ref, w2_ref, b2_ref, pe_ref, o_ref, p1pad_ref):
        # x_ref: (L+4, 1) zero-padded input sequence (channels-last, Cin=1).
        # conv output at position p uses padded rows p..p+4; MaxPool1d(2) takes
        # max over (2l, 2l+1) -> evaluate the even/odd sub-grids directly via
        # stride-2 reads and fuse the 5 taps into one K=5 matmul.
        def conv1_relu(par):
            taps = jnp.concatenate(
                [x_ref[pl.ds(k + par, L2, stride=2), :] for k in range(5)],
                axis=1)                                            # (L2, 5)
            h = jnp.dot(taps, w1_ref[...],
                        preferred_element_type=jnp.float32,
                        precision=HIGHEST) + b1_ref[...]
            return jnp.maximum(h, 0.0)

        p1 = jnp.maximum(conv1_relu(0), conv1_relu(1))             # (L2, C1)

        # conv2 needs 2 rows of zero padding around p1 -> small VMEM scratch.
        # Zero only the 4 boundary rows (interior rows are fully overwritten).
        p1pad_ref[0:2, :] = jnp.zeros((2, C1), jnp.float32)
        p1pad_ref[L2 + 2:L2 + 4, :] = jnp.zeros((2, C1), jnp.float32)
        p1pad_ref[2:2 + L2, :] = p1

        def conv2_relu(par):
            taps = jnp.concatenate(
                [p1pad_ref[pl.ds(k + par, L4, stride=2), :] for k in range(5)],
                axis=1)                                            # (L4, 5*C1)
            h = jnp.dot(taps, w2_ref[...],
                        preferred_element_type=jnp.float32,
                        precision=HIGHEST) + b2_ref[...]
            return jnp.maximum(h, 0.0)

        feat = jnp.maximum(conv2_relu(0), conv2_relu(1))           # (L4, C2)
        o_ref[...] = (feat + pe_ref[...]).astype(o_ref.dtype)

    return kernel


# --------------------- kernel 2: pyramid attention + means --------------------
def _make_pyramid_kernel(S, E, H, scales):
    Dh = E // H
    qscale = 1.0 / math.sqrt(Dh)

    def kernel(feat_ref, wqkv_ref, bqkv_ref, wo_ref, bo_ref, wmean_ref, o_ref):
        # feat_ref: (S, E) features of this batch element (read once from HBM).
        acc = jnp.zeros((1, E), jnp.float32)
        for i, sc in enumerate(scales):                 # static unroll
            Sp = S // sc
            # max-pool along the sequence from the resident feature block
            if sc == 1:
                xp = feat_ref[...]
            else:
                xp = feat_ref[pl.ds(0, Sp, stride=sc), :]
                for j in range(1, sc):
                    xp = jnp.maximum(xp, feat_ref[pl.ds(j, Sp, stride=sc), :])

            # fused QKV projection: one (Sp, E) @ (E, 3E) matmul
            qkv = jnp.dot(xp, wqkv_ref[i],
                          preferred_element_type=jnp.float32,
                          precision=HIGHEST) + bqkv_ref[i]
            q = qkv[:, 0 * E:1 * E] * qscale
            k = qkv[:, 1 * E:2 * E]
            v = qkv[:, 2 * E:3 * E]
            kt = k.T                                    # (E, Sp): one transpose

            heads = []
            for h in range(H):
                qh = q[:, h * Dh:(h + 1) * Dh]          # (Sp, Dh)
                kh_t = kt[h * Dh:(h + 1) * Dh, :]       # (Dh, Sp)
                vh = v[:, h * Dh:(h + 1) * Dh]          # (Sp, Dh)
                s = jnp.dot(qh, kh_t, preferred_element_type=jnp.float32,
                            precision=HIGHEST)          # (Sp, Sp)
                s = s - jnp.max(s, axis=-1, keepdims=True)
                p = jnp.exp(s)
                p = p / jnp.sum(p, axis=-1, keepdims=True)
                heads.append(jnp.dot(p, vh, preferred_element_type=jnp.float32,
                                     precision=HIGHEST))
            ctx = jnp.concatenate(heads, axis=-1)        # (Sp, E)

            out_s = jnp.dot(ctx, wo_ref[i],
                            preferred_element_type=jnp.float32,
                            precision=HIGHEST) + bo_ref[i]

            # F.interpolate(nearest, size=d_model) -> mean(scales) -> mean(dim=1)
            # folded into one weighted-sum matmul (weights precomputed).
            acc = acc + jnp.dot(wmean_ref[i, 0:1, 0:Sp], out_s,
                                preferred_element_type=jnp.float32,
                                precision=HIGHEST)
        o_ref[...] = acc.astype(o_ref.dtype)

    return kernel


# --------------------------------- helpers ------------------------------------
def sinusoidal_pos_enc(seq_len, d_model):
    pos = np.arange(seq_len, dtype=np.float32)[:, None]
    div = np.exp(np.arange(0, d_model, 2, dtype=np.float32)
                 * (-math.log(10000.0) / d_model))
    pe = np.zeros((seq_len, d_model), dtype=np.float32)
    pe[:, 0::2] = np.sin(pos * div)
    pe[:, 1::2] = np.cos(pos * div)
    return jnp.asarray(pe)


def _nearest_mean_weights(in_len, out_len, n_scales, pad_to):
    """Row weights w such that  w @ x  ==  mean over rows of
    F.interpolate(x, size=out_len, mode='nearest') / n_scales."""
    idx = np.minimum((np.arange(out_len) * (in_len / out_len)).astype(np.int64),
                     in_len - 1)
    counts = np.bincount(idx, minlength=in_len).astype(np.float32)
    w = np.zeros((1, pad_to), dtype=np.float32)
    w[0, :in_len] = counts / (out_len * n_scales)
    return w


# --------------------------------- wrapper ------------------------------------
def cnnp_attention_pallas(x, params, scales=SCALES, num_heads=NUM_HEADS):
    """x: (N, 1, L) float32 (PyTorch NCW).  Returns (N, d_model)."""
    N, Cin, L = x.shape
    assert Cin == 1
    C1 = params['conv1_w'].shape[0]        # 16
    E = params['conv2_w'].shape[0]         # 32 == d_model
    L2 = L // 2
    S = L2 // 2                            # seq_len seen by the attention

    # ---------------- kernel 1: fused CNN frontend ----------------------------
    xcol = jnp.pad(x[:, 0, :], ((0, 0), (2, 2)))[..., None]         # (N, L+4, 1)
    w1k = jnp.transpose(params['conv1_w'], (2, 1, 0)).reshape(5, C1)
    b1 = params['conv1_b'].reshape(1, C1)
    w2k = jnp.transpose(params['conv2_w'], (2, 1, 0)).reshape(5 * C1, E)
    b2 = params['conv2_b'].reshape(1, E)
    pe = sinusoidal_pos_enc(S, E)

    feat = pl.pallas_call(
        _make_cnn_kernel(L, C1),
        out_shape=jax.ShapeDtypeStruct((N, S, E), jnp.float32),
        grid=(N,),
        in_specs=[
            pl.BlockSpec((None, L + 4, 1), lambda b: (b, 0, 0)),
            pl.BlockSpec((5, C1), lambda b: (0, 0)),
            pl.BlockSpec((1, C1), lambda b: (0, 0)),
            pl.BlockSpec((5 * C1, E), lambda b: (0, 0)),
            pl.BlockSpec((1, E), lambda b: (0, 0)),
            pl.BlockSpec((S, E), lambda b: (0, 0)),
        ],
        out_specs=pl.BlockSpec((None, S, E), lambda b: (b, 0, 0)),
        scratch_shapes=[pltpu.VMEM((L2 + 4, C1), jnp.float32)],
        compiler_params=pltpu.CompilerParams(dimension_semantics=("parallel",)),
    )(xcol.astype(jnp.float32), w1k.astype(jnp.float32), b1.astype(jnp.float32),
      w2k.astype(jnp.float32), b2.astype(jnp.float32), pe)

    # ---------------- kernel 2: pyramid attention + means ---------------------
    attn = params['attn']
    n_s = len(scales)
    wqkv = jnp.stack([p['in_w'].T for p in attn]).astype(jnp.float32)        # (3,E,3E)
    bqkv = jnp.stack([p['in_b'].reshape(1, 3 * E) for p in attn]).astype(jnp.float32)
    wo = jnp.stack([p['out_w'].T for p in attn]).astype(jnp.float32)         # (3,E,E)
    bo = jnp.stack([p['out_b'].reshape(1, E) for p in attn]).astype(jnp.float32)
    wmean = jnp.asarray(np.stack(
        [_nearest_mean_weights(S // s, E, n_s, S) for s in scales]))         # (3,1,S)

    out3 = pl.pallas_call(
        _make_pyramid_kernel(S, E, num_heads, scales),
        out_shape=jax.ShapeDtypeStruct((N, 1, E), jnp.float32),
        grid=(N,),
        in_specs=[
            pl.BlockSpec((None, S, E), lambda b: (b, 0, 0)),
            pl.BlockSpec((n_s, E, 3 * E), lambda b: (0, 0, 0)),
            pl.BlockSpec((n_s, 1, 3 * E), lambda b: (0, 0, 0)),
            pl.BlockSpec((n_s, E, E), lambda b: (0, 0, 0)),
            pl.BlockSpec((n_s, 1, E), lambda b: (0, 0, 0)),
            pl.BlockSpec((n_s, 1, S), lambda b: (0, 0, 0)),
        ],
        out_specs=pl.BlockSpec((None, 1, E), lambda b: (b, 0, 0)),
        compiler_params=pltpu.CompilerParams(dimension_semantics=("parallel",)),
    )(feat, wqkv, bqkv, wo, bo, wmean)

    return out3[:, 0, :]


# --------------------------- pure-JAX reference --------------------------------
def _conv1d_ref(x, w, b, padding):
    N, C, L = x.shape
    O, I, K = w.shape
    xp = jnp.pad(x, ((0, 0), (0, 0), (padding, padding)))
    Lout = L + 2 * padding - K + 1
    out = jnp.zeros((N, O, Lout), jnp.float32)
    for k in range(K):
        out = out + jnp.einsum('ncl,oc->nol', xp[:, :, k:k + Lout], w[:, :, k])
    return out + b[None, :, None]


def _maxpool1d_ref(x, k):
    N, C, L = x.shape
    Lo = L // k
    return jnp.max(x[:, :, :Lo * k].reshape(N, C, Lo, k), axis=-1)


def _mha_ref(x, p, num_heads):
    N, S, E = x.shape
    Dh = E // num_heads
    qkv = x @ p['in_w'].T + p['in_b']
    q, k, v = qkv[..., :E], qkv[..., E:2 * E], qkv[..., 2 * E:]

    def split(t):
        return t.reshape(N, S, num_heads, Dh).transpose(0, 2, 1, 3)

    q, k, v = split(q), split(k), split(v)
    s = (q @ jnp.swapaxes(k, -1, -2)) / math.sqrt(Dh)
    a = jax.nn.softmax(s, axis=-1)
    o = (a @ v).transpose(0, 2, 1, 3).reshape(N, S, E)
    return o @ p['out_w'].T + p['out_b']


def cnnp_attention_ref(x, params, scales=SCALES, num_heads=NUM_HEADS):
    h = jax.nn.relu(_conv1d_ref(x, params['conv1_w'], params['conv1_b'], 2))
    h = _maxpool1d_ref(h, 2)
    h = jax.nn.relu(_conv1d_ref(h, params['conv2_w'], params['conv2_b'], 2))
    h = _maxpool1d_ref(h, 2)
    h = jnp.transpose(h, (0, 2, 1))                       # (N, S, E)
    N, S, E = h.shape
    h = h + sinusoidal_pos_enc(S, E)
    T = E                                                 # original_shape[2]
    outs = []
    for scale, p in zip(scales, params['attn']):
        if scale > 1:
            xp = jnp.transpose(
                _maxpool1d_ref(jnp.transpose(h, (0, 2, 1)), scale), (0, 2, 1))
        else:
            xp = h
        a = _mha_ref(xp, p, num_heads)                    # (N, Sp, E)
        Sp = a.shape[1]
        idx = np.minimum((np.arange(T) * (Sp / T)).astype(np.int64), Sp - 1)
        outs.append(a[:, idx, :])
    out = jnp.mean(jnp.stack(outs), axis=0)               # (N, T, E)
    return jnp.mean(out, axis=1)                          # (N, E)


# ---------------------------------- params -------------------------------------
def init_params(key, c1=16, d_model=D_MODEL, n_scales=len(SCALES)):
    ks = jax.random.split(key, 4 + 4 * n_scales)

    def nrm(k, shape, scale):
        return jax.random.normal(k, shape, jnp.float32) * scale

    params = {
        'conv1_w': nrm(ks[0], (c1, 1, 5), 0.3),
        'conv1_b': nrm(ks[1], (c1,), 0.1),
        'conv2_w': nrm(ks[2], (d_model, c1, 5), 0.1),
        'conv2_b': nrm(ks[3], (d_model,), 0.1),
        'attn': [],
    }
    for i in range(n_scales):
        k0, k1, k2, k3 = ks[4 + 4 * i: 8 + 4 * i]
        params['attn'].append({
            'in_w': nrm(k0, (3 * d_model, d_model), 0.1),
            'in_b': nrm(k1, (3 * d_model,), 0.05),
            'out_w': nrm(k2, (d_model, d_model), 0.1),
            'out_b': nrm(k3, (d_model,), 0.05),
        })
    return params


# ----------------------------------- main ---------------------------------------
if __name__ == "__main__":
    key = jax.random.PRNGKey(0)
    kx, kp = jax.random.split(key)

    N, L = 2, 64                       # -> seq_len after CNN = 16, d_model = 32
    x = jax.random.normal(kx, (N, 1, L), jnp.float32)
    params = init_params(kp)

    out = jax.block_until_ready(cnnp_attention_pallas(x, params))
    ref = jax.block_until_ready(cnnp_attention_ref(x, params))
    np.testing.assert_allclose(np.asarray(out), np.asarray(ref),
                               atol=2e-4, rtol=2e-3)

    print("KERNEL_OK")
</pallas_src>

<mosaic_0001>
module attributes {stable_mosaic.version = 11 : i64} {
  func.func @kernel(%arg0: i32, %arg1: memref<1x68x1xf32, #tpu.memory_space<vmem>>, %arg2: memref<5x16xf32, #tpu.memory_space<vmem>>, %arg3: memref<1x16xf32, #tpu.memory_space<vmem>>, %arg4: memref<80x32xf32, #tpu.memory_space<vmem>>, %arg5: memref<1x32xf32, #tpu.memory_space<vmem>>, %arg6: memref<16x32xf32, #tpu.memory_space<vmem>>, %arg7: memref<1x16x32xf32, #tpu.memory_space<vmem>>, %arg8: memref<36x16xf32, #tpu.memory_space<vmem>>) attributes {dimension_semantics = [#tpu.dimension_semantics<parallel>], iteration_bounds = array<i64: 2>, scalar_prefetch = 0 : i64, scratch_operands = 1 : i64, tpu.core_type = #tpu.core_type<tc>, window_params = [{transform_indices = @transform_0, window_bounds = array<i64: 1, 68, 1>}, {pipeline_mode = #tpu.pipeline_mode<synchronous>, transform_indices = @transform_1, window_bounds = array<i64: 5, 16>}, {pipeline_mode = #tpu.pipeline_mode<synchronous>, transform_indices = @transform_2, window_bounds = array<i64: 1, 16>}, {pipeline_mode = #tpu.pipeline_mode<synchronous>, transform_indices = @transform_3, window_bounds = array<i64: 80, 32>}, {pipeline_mode = #tpu.pipeline_mode<synchronous>, transform_indices = @transform_4, window_bounds = array<i64: 1, 32>}, {pipeline_mode = #tpu.pipeline_mode<synchronous>, transform_indices = @transform_5, window_bounds = array<i64: 16, 32>}, {transform_indices = @transform_6, window_bounds = array<i64: 1, 16, 32>}]} {
    %c0 = arith.constant 0 : index
    %c0_0 = arith.constant 0 : index
    %c0_1 = arith.constant 0 : index
    %0 = tpu.strided_load %arg1[%c0, %c0_0, %c0_1] {strides = array<i32: 1, 2, 1>} : memref<1x68x1xf32, #tpu.memory_space<vmem>>, vector<1x32x1xf32>
    %1 = vector.shape_cast %0 : vector<1x32x1xf32> to vector<32x1xf32>
    %c0_2 = arith.constant 0 : index
    %c1 = arith.constant 1 : index
    %c0_3 = arith.constant 0 : index
    %2 = tpu.strided_load %arg1[%c0_2, %c1, %c0_3] {strides = array<i32: 1, 2, 1>} : memref<1x68x1xf32, #tpu.memory_space<vmem>>, vector<1x32x1xf32>
    %3 = vector.shape_cast %2 : vector<1x32x1xf32> to vector<32x1xf32>
    %c0_4 = arith.constant 0 : index
    %c2 = arith.constant 2 : index
    %c0_5 = arith.constant 0 : index
    %4 = tpu.strided_load %arg1[%c0_4, %c2, %c0_5] {strides = array<i32: 1, 2, 1>} : memref<1x68x1xf32, #tpu.memory_space<vmem>>, vector<1x32x1xf32>
    %5 = vector.shape_cast %4 : vector<1x32x1xf32> to vector<32x1xf32>
    %c0_6 = arith.constant 0 : index
    %c3 = arith.constant 3 : index
    %c0_7 = arith.constant 0 : index
    %6 = tpu.strided_load %arg1[%c0_6, %c3, %c0_7] {strides = array<i32: 1, 2, 1>} : memref<1x68x1xf32, #tpu.memory_space<vmem>>, vector<1x32x1xf32>
    %7 = vector.shape_cast %6 : vector<1x32x1xf32> to vector<32x1xf32>
    %c0_8 = arith.constant 0 : index
    %c4 = arith.constant 4 : index
    %c0_9 = arith.constant 0 : index
    %8 = tpu.strided_load %arg1[%c0_8, %c4, %c0_9] {strides = array<i32: 1, 2, 1>} : memref<1x68x1xf32, #tpu.memory_space<vmem>>, vector<1x32x1xf32>
    %9 = vector.shape_cast %8 : vector<1x32x1xf32> to vector<32x1xf32>
    %10 = tpu.concatenate %1, %3, %5, %7, %9 in 1 : vector<32x1xf32>, vector<32x1xf32>, vector<32x1xf32>, vector<32x1xf32>, vector<32x1xf32> -> vector<32x5xf32>
    %c0_10 = arith.constant 0 : index
    %c0_11 = arith.constant 0 : index
    %11 = vector.load %arg2[%c0_10, %c0_11] : memref<5x16xf32, #tpu.memory_space<vmem>>, vector<5x16xf32>
    %cst = arith.constant dense<0.000000e+00> : vector<32x16xf32>
    %12 = tpu.matmul %10, %11, %cst {dimension_numbers = #tpu.dot_dimension_numbers<[1], [0], [0], [1], [0, 0, 1, 1], [], []>, precision = #tpu.contract_precision<fp32>} : vector<32x5xf32>, vector<5x16xf32>, vector<32x16xf32> -> vector<32x16xf32>
    %c0_12 = arith.constant 0 : index
    %c0_13 = arith.constant 0 : index
    %13 = vector.load %arg3[%c0_12, %c0_13] : memref<1x16xf32, #tpu.memory_space<vmem>>, vector<1x16xf32>
    %14 = vector.broadcast %13 : vector<1x16xf32> to vector<32x16xf32>
    %15 = arith.addf %12, %14 : vector<32x16xf32>
    %cst_14 = arith.constant 0.000000e+00 : f32
    %16 = vector.broadcast %cst_14 : f32 to vector<32x16xf32>
    %17 = arith.maximumf %15, %16 : vector<32x16xf32>
    %c0_15 = arith.constant 0 : index
    %c1_16 = arith.constant 1 : index
    %c0_17 = arith.constant 0 : index
    %18 = tpu.strided_load %arg1[%c0_15, %c1_16, %c0_17] {strides = array<i32: 1, 2, 1>} : memref<1x68x1xf32, #tpu.memory_space<vmem>>, vector<1x32x1xf32>
    %19 = vector.shape_cast %18 : vector<1x32x1xf32> to vector<32x1xf32>
    %c0_18 = arith.constant 0 : index
    %c2_19 = arith.constant 2 : index
    %c0_20 = arith.constant 0 : index
    %20 = tpu.strided_load %arg1[%c0_18, %c2_19, %c0_20] {strides = array<i32: 1, 2, 1>} : memref<1x68x1xf32, #tpu.memory_space<vmem>>, vector<1x32x1xf32>
    %21 = vector.shape_cast %20 : vector<1x32x1xf32> to vector<32x1xf32>
    %c0_21 = arith.constant 0 : index
    %c3_22 = arith.constant 3 : index
    %c0_23 = arith.constant 0 : index
    %22 = tpu.strided_load %arg1[%c0_21, %c3_22, %c0_23] {strides = array<i32: 1, 2, 1>} : memref<1x68x1xf32, #tpu.memory_space<vmem>>, vector<1x32x1xf32>
    %23 = vector.shape_cast %22 : vector<1x32x1xf32> to vector<32x1xf32>
    %c0_24 = arith.constant 0 : index
    %c4_25 = arith.constant 4 : index
    %c0_26 = arith.constant 0 : index
    %24 = tpu.strided_load %arg1[%c0_24, %c4_25, %c0_26] {strides = array<i32: 1, 2, 1>} : memref<1x68x1xf32, #tpu.memory_space<vmem>>, vector<1x32x1xf32>
    %25 = vector.shape_cast %24 : vector<1x32x1xf32> to vector<32x1xf32>
    %c0_27 = arith.constant 0 : index
    %c5 = arith.constant 5 : index
    %c0_28 = arith.constant 0 : index
    %26 = tpu.strided_load %arg1[%c0_27, %c5, %c0_28] {strides = array<i32: 1, 2, 1>} : memref<1x68x1xf32, #tpu.memory_space<vmem>>, vector<1x32x1xf32>
    %27 = vector.shape_cast %26 : vector<1x32x1xf32> to vector<32x1xf32>
    %28 = tpu.concatenate %19, %21, %23, %25, %27 in 1 : vector<32x1xf32>, vector<32x1xf32>, vector<32x1xf32>, vector<32x1xf32>, vector<32x1xf32> -> vector<32x5xf32>
    %c0_29 = arith.constant 0 : index
    %c0_30 = arith.constant 0 : index
    %29 = vector.load %arg2[%c0_29, %c0_30] : memref<5x16xf32, #tpu.memory_space<vmem>>, vector<5x16xf32>
    %cst_31 = arith.constant dense<0.000000e+00> : vector<32x16xf32>
    %30 = tpu.matmul %28, %29, %cst_31 {dimension_numbers = #tpu.dot_dimension_numbers<[1], [0], [0], [1], [0, 0, 1, 1], [], []>, precision = #tpu.contract_precision<fp32>} : vector<32x5xf32>, vector<5x16xf32>, vector<32x16xf32> -> vector<32x16xf32>
    %c0_32 = arith.constant 0 : index
    %c0_33 = arith.constant 0 : index
    %31 = vector.load %arg3[%c0_32, %c0_33] : memref<1x16xf32, #tpu.memory_space<vmem>>, vector<1x16xf32>
    %32 = vector.broadcast %31 : vector<1x16xf32> to vector<32x16xf32>
    %33 = arith.addf %30, %32 : vector<32x16xf32>
    %cst_34 = arith.constant 0.000000e+00 : f32
    %34 = vector.broadcast %cst_34 : f32 to vector<32x16xf32>
    %35 = arith.maximumf %33, %34 : vector<32x16xf32>
    %36 = arith.maximumf %17, %35 : vector<32x16xf32>
    %cst_35 = arith.constant 0.000000e+00 : f32
    %37 = vector.broadcast %cst_35 : f32 to vector<2x16xf32>
    %c0_36 = arith.constant 0 : index
    %c0_37 = arith.constant 0 : index
    %38 = vector.load %arg8[%c0_36, %c0_37] : memref<36x16xf32, #tpu.memory_space<vmem>>, vector<2x16xf32>
    tpu.vector_store %arg8[%c0_36, %c0_37], %37 {strides = array<i32>} : memref<36x16xf32, #tpu.memory_space<vmem>>, vector<2x16xf32>,
    %cst_38 = arith.constant 0.000000e+00 : f32
    %39 = vector.broadcast %cst_38 : f32 to vector<2x16xf32>
    %c34 = arith.constant 34 : index
    %c0_39 = arith.constant 0 : index
    %40 = vector.load %arg8[%c34, %c0_39] : memref<36x16xf32, #tpu.memory_space<vmem>>, vector<2x16xf32>
    tpu.vector_store %arg8[%c34, %c0_39], %39 {strides = array<i32>} : memref<36x16xf32, #tpu.memory_space<vmem>>, vector<2x16xf32>,
    %c2_40 = arith.constant 2 : index
    %c0_41 = arith.constant 0 : index
    %41 = vector.load %arg8[%c2_40, %c0_41] : memref<36x16xf32, #tpu.memory_space<vmem>>, vector<32x16xf32>
    tpu.vector_store %arg8[%c2_40, %c0_41], %36 {strides = array<i32>} : memref<36x16xf32, #tpu.memory_space<vmem>>, vector<32x16xf32>,
    %c0_42 = arith.constant 0 : index
    %c0_43 = arith.constant 0 : index
    %42 = tpu.strided_load %arg8[%c0_42, %c0_43] {strides = array<i32: 2, 1>} : memref<36x16xf32, #tpu.memory_space<vmem>>, vector<16x16xf32>
    %c1_44 = arith.constant 1 : index
    %c0_45 = arith.constant 0 : index
    %43 = tpu.strided_load %arg8[%c1_44, %c0_45] {strides = array<i32: 2, 1>} : memref<36x16xf32, #tpu.memory_space<vmem>>, vector<16x16xf32>
    %c2_46 = arith.constant 2 : index
    %c0_47 = arith.constant 0 : index
    %44 = tpu.strided_load %arg8[%c2_46, %c0_47] {strides = array<i32: 2, 1>} : memref<36x16xf32, #tpu.memory_space<vmem>>, vector<16x16xf32>
    %c3_48 = arith.constant 3 : index
    %c0_49 = arith.constant 0 : index
    %45 = tpu.strided_load %arg8[%c3_48, %c0_49] {strides = array<i32: 2, 1>} : memref<36x16xf32, #tpu.memory_space<vmem>>, vector<16x16xf32>
    %c4_50 = arith.constant 4 : index
    %c0_51 = arith.constant 0 : index
    %46 = tpu.strided_load %arg8[%c4_50, %c0_51] {strides = array<i32: 2, 1>} : memref<36x16xf32, #tpu.memory_space<vmem>>, vector<16x16xf32>
    %47 = tpu.concatenate %42, %43, %44, %45, %46 in 1 : vector<16x16xf32>, vector<16x16xf32>, vector<16x16xf32>, vector<16x16xf32>, vector<16x16xf32> -> vector<16x80xf32>
    %c0_52 = arith.constant 0 : index
    %c0_53 = arith.constant 0 : index
    %48 = vector.load %arg4[%c0_52, %c0_53] : memref<80x32xf32, #tpu.memory_space<vmem>>, vector<80x32xf32>
    %cst_54 = arith.constant dense<0.000000e+00> : vector<16x32xf32>
    %49 = tpu.matmul %47, %48, %cst_54 {dimension_numbers = #tpu.dot_dimension_numbers<[1], [0], [0], [1], [0, 0, 1, 1], [], []>, precision = #tpu.contract_precision<fp32>} : vector<16x80xf32>, vector<80x32xf32>, vector<16x32xf32> -> vector<16x32xf32>
    %c0_55 = arith.constant 0 : index
    %c0_56 = arith.constant 0 : index
    %50 = vector.load %arg5[%c0_55, %c0_56] : memref<1x32xf32, #tpu.memory_space<vmem>>, vector<1x32xf32>
    %51 = vector.broadcast %50 : vector<1x32xf32> to vector<16x32xf32>
    %52 = arith.addf %49, %51 : vector<16x32xf32>
    %cst_57 = arith.constant 0.000000e+00 : f32
    %53 = vector.broadcast %cst_57 : f32 to vector<16x32xf32>
    %54 = arith.maximumf %52, %53 : vector<16x32xf32>
    %c1_58 = arith.constant 1 : index
    %c0_59 = arith.constant 0 : index
    %55 = tpu.strided_load %arg8[%c1_58, %c0_59] {strides = array<i32: 2, 1>} : memref<36x16xf32, #tpu.memory_space<vmem>>, vector<16x16xf32>
    %c2_60 = arith.constant 2 : index
    %c0_61 = arith.constant 0 : index
    %56 = tpu.strided_load %arg8[%c2_60, %c0_61] {strides = array<i32: 2, 1>} : memref<36x16xf32, #tpu.memory_space<vmem>>, vector<16x16xf32>
    %c3_62 = arith.constant 3 : index
    %c0_63 = arith.constant 0 : index
    %57 = tpu.strided_load %arg8[%c3_62, %c0_63] {strides = array<i32: 2, 1>} : memref<36x16xf32, #tpu.memory_space<vmem>>, vector<16x16xf32>
    %c4_64 = arith.constant 4 : index
    %c0_65 = arith.constant 0 : index
    %58 = tpu.strided_load %arg8[%c4_64, %c0_65] {strides = array<i32: 2, 1>} : memref<36x16xf32, #tpu.memory_space<vmem>>, vector<16x16xf32>
    %c5_66 = arith.constant 5 : index
    %c0_67 = arith.constant 0 : index
    %59 = tpu.strided_load %arg8[%c5_66, %c0_67] {strides = array<i32: 2, 1>} : memref<36x16xf32, #tpu.memory_space<vmem>>, vector<16x16xf32>
    %60 = tpu.concatenate %55, %56, %57, %58, %59 in 1 : vector<16x16xf32>, vector<16x16xf32>, vector<16x16xf32>, vector<16x16xf32>, vector<16x16xf32> -> vector<16x80xf32>
    %c0_68 = arith.constant 0 : index
    %c0_69 = arith.constant 0 : index
    %61 = vector.load %arg4[%c0_68, %c0_69] : memref<80x32xf32, #tpu.memory_space<vmem>>, vector<80x32xf32>
    %cst_70 = arith.constant dense<0.000000e+00> : vector<16x32xf32>
    %62 = tpu.matmul %60, %61, %cst_70 {dimension_numbers = #tpu.dot_dimension_numbers<[1], [0], [0], [1], [0, 0, 1, 1], [], []>, precision = #tpu.contract_precision<fp32>} : vector<16x80xf32>, vector<80x32xf32>, vector<16x32xf32> -> vector<16x32xf32>
    %c0_71 = arith.constant 0 : index
    %c0_72 = arith.constant 0 : index
    %63 = vector.load %arg5[%c0_71, %c0_72] : memref<1x32xf32, #tpu.memory_space<vmem>>, vector<1x32xf32>
    %64 = vector.broadcast %63 : vector<1x32xf32> to vector<16x32xf32>
    %65 = arith.addf %62, %64 : vector<16x32xf32>
    %cst_73 = arith.constant 0.000000e+00 : f32
    %66 = vector.broadcast %cst_73 : f32 to vector<16x32xf32>
    %67 = arith.maximumf %65, %66 : vector<16x32xf32>
    %68 = arith.maximumf %54, %67 : vector<16x32xf32>
    %c0_74 = arith.constant 0 : index
    %c0_75 = arith.constant 0 : index
    %69 = vector.load %arg6[%c0_74, %c0_75] : memref<16x32xf32, #tpu.memory_space<vmem>>, vector<16x32xf32>
    %70 = arith.addf %68, %69 : vector<16x32xf32>
    %c0_76 = arith.constant 0 : index
    %c0_77 = arith.constant 0 : index
    %c0_78 = arith.constant 0 : index
    %71 = vector.load %arg7[%c0_76, %c0_77, %c0_78] : memref<1x16x32xf32, #tpu.memory_space<vmem>>, vector<1x16x32xf32>
    %72 = vector.shape_cast %71 : vector<1x16x32xf32> to vector<16x32xf32>
    %73 = vector.shape_cast %70 : vector<16x32xf32> to vector<1x16x32xf32>
    tpu.vector_store %arg7[%c0_76, %c0_77, %c0_78], %73 {strides = array<i32>} : memref<1x16x32xf32, #tpu.memory_space<vmem>>, vector<1x16x32xf32>,
    return
  }
  func.func @transform_0(%arg0: i32) -> (i32, i32, i32) {
    %c0_i32 = arith.constant 0 : i32
    %c0_i32_0 = arith.constant 0 : i32
    %c0_i32_1 = arith.constant 0 : i32
    return %arg0, %c0_i32, %c0_i32_0 : i32, i32, i32
  }
  func.func @transform_1(%arg0: i32) -> (i32, i32) {
    %c0_i32 = arith.constant 0 : i32
    %c0_i32_0 = arith.constant 0 : i32
    %c0_i32_1 = arith.constant 0 : i32
    return %c0_i32, %c0_i32_0 : i32, i32
  }
  func.func @transform_2(%arg0: i32) -> (i32, i32) {
    %c0_i32 = arith.constant 0 : i32
    %c0_i32_0 = arith.constant 0 : i32
    %c0_i32_1 = arith.constant 0 : i32
    return %c0_i32, %c0_i32_0 : i32, i32
  }
  func.func @transform_3(%arg0: i32) -> (i32, i32) {
    %c0_i32 = arith.constant 0 : i32
    %c0_i32_0 = arith.constant 0 : i32
    %c0_i32_1 = arith.constant 0 : i32
    return %c0_i32, %c0_i32_0 : i32, i32
  }
  func.func @transform_4(%arg0: i32) -> (i32, i32) {
    %c0_i32 = arith.constant 0 : i32
    %c0_i32_0 = arith.constant 0 : i32
    %c0_i32_1 = arith.constant 0 : i32
    return %c0_i32, %c0_i32_0 : i32, i32
  }
  func.func @transform_5(%arg0: i32) -> (i32, i32) {
    %c0_i32 = arith.constant 0 : i32
    %c0_i32_0 = arith.constant 0 : i32
    %c0_i32_1 = arith.constant 0 : i32
    return %c0_i32, %c0_i32_0 : i32, i32
  }
  func.func @transform_6(%arg0: i32) -> (i32, i32, i32) {
    %c0_i32 = arith.constant 0 : i32
    %c0_i32_0 = arith.constant 0 : i32
    %c0_i32_1 = arith.constant 0 : i32
    return %arg0, %c0_i32, %c0_i32_0 : i32, i32, i32
  }
}

</mosaic_0001>

<llo_original>
// kernel: tpu_custom_call.1
$region0: #{tpu_custom_call.1}
  #allocation0 [shape = 'u32[]', space=smem, size = 0x4, offset = 0x4, fixed_abs, tag = 'smem constant byte address 0x4 - core index']
  #allocation1 [shape = 'u32[72,128]{1,0:T(1,128)}', space=vmem, size = 0x9000, scoped, tag = 'internal scratch']
  #allocation2 [shape = 'f32[36,16]{1,0:T(8,128)}', space=vmem, size = 0x5000, scoped, tag = 'scratch operand']
  %s0 = inlined_call_operand.vmem [shape: f32[2,68,1], index: 0, kind: input, shape index: {}]
  %s1 = inlined_call_operand.vmem [shape: f32[5,16], index: 1, kind: input, shape index: {}]
  %s2 = inlined_call_operand.vmem [shape: f32[1,16], index: 2, kind: input, shape index: {}]
  %s3 = inlined_call_operand.vmem [shape: f32[80,32], index: 3, kind: input, shape index: {}]
  %s4 = inlined_call_operand.vmem [shape: f32[1,32], index: 4, kind: input, shape index: {}]
  %s5 = inlined_call_operand.vmem [shape: f32[16,32], index: 5, kind: input, shape index: {}]
  %s6 = inlined_call_operand.hbm [shape: f32[2,16,32], index: 6, kind: output, shape index: {}]
  %s7 = sld [smem:[#allocation0]]
  $region57: #{tpu_custom_call.1} parent=0
    _
  %s9 = ssub.s32 1, %s7
  %s10 = scalar_select 0, %s9, %s7
  $region1: #{tpu_custom_call.1} parent=0
    #allocation3 [shape = 'u8[16384]{0}', space=vmem, size = 0x4000, scoped, tag = 'output window, operand 0']
    #allocation4 [shape = 's32[2]{0}', space=sflag, size = 0x8, scoped, tag = 'scoped memory for tpu_custom_call.1']
    %11 = vsyncpa [#allocation4], 0
    %s12 = scalar_lea.sflag [#allocation4], 1
    %13 = vsyncpa %s12, 0
    loop: start=0, step=1, limit=4
    $region2: #{tpu_custom_call.1} parent=1 // loop_pre_header
      _
    $region3: #{tpu_custom_call.1} parent=1 // loop_header
      %s15 = sphi 0, %s19
      %p16 = scmp.ge.s32.totalorder %s15, 4
      %s25 = sphi 0, %s27
      %s28 = sphi 0, %s25
      %s29 = sphi 0, %s28
      %s45 = sphi 0, %s29
      %s49 = sphi 0, %s49
      %s51 = sphi 0, %s49
      %s52 = sphi 0, %s51
      %s66 = sphi 0, %s52
      %s70 = sphi 0, %s70
      %s72 = sphi 0, %s70
      %s73 = sphi 0, %s72
      %s87 = sphi 0, %s73
      %s91 = sphi 0, %s91
      %s93 = sphi 0, %s91
      %s94 = sphi 0, %s93
      %s108 = sphi 0, %s94
      %s112 = sphi 0, %s112
      %s114 = sphi 0, %s112
      %s115 = sphi 0, %s114
      %s129 = sphi 0, %s115
      %s133 = sphi 0, %s133
      %s135 = sphi 0, %s133
      %s136 = sphi 0, %s135
      %s150 = sphi 0, %s136
      %s156 = sphi 0, %s158
      %s159 = sphi 0, %s156
      %s160 = sphi 0, %s159
      %s176 = sphi 0, %s160
    $region4: #{tpu_custom_call.1} parent=1 // loop_header_branch
      %18 = sbr.rel (%p16) target = $region8
    $region5: #{tpu_custom_call.1} parent=1 // loop_body
      %s20 = ssub.s32 %s15, 1
      %s21 = ssub.s32 %s15, 2
      %s22 = sadd.s32 %s15, 1
      %s23 = ssub.s32 %s15, %s22
      %p24 = scmp.eq.s32.totalorder %s23, 0
      %s26 = sadd.s32 %s25, 1
      %s27 = scalar_select %p24, %s25, %s26
      %p30 = pneg %p24
      %p31 = scmp.eq.s32.totalorder %s15, 1
      %p32 = por %p30, %p31
      %p33 = scmp.ne.s32.totalorder %s25, %s28
      %p34 = scmp.eq.s32.totalorder %s15, 0
      %p35 = por %p33, %p34
      %p36 = scmp.ne.s32.totalorder %s25, %s28
      %p37 = scmp.eq.s32.totalorder %s20, 1
      %p38 = por %p36, %p37
      %p39 = scmp.ne.s32.totalorder %s28, %s29
      %p40 = scmp.eq.s32.totalorder %s20, 0
      %p41 = por %p39, %p40
      %p42 = scmp.ne.s32.totalorder %s28, %s29
      %p43 = scmp.eq.s32.totalorder %s21, 1
      %p44 = por %p42, %p43
      %p46 = scmp.ne.s32.totalorder %s29, %s45
      %p47 = scmp.eq.s32.totalorder %s21, 0
      %p48 = por %p46, %p47
      %s50 = sadd.s32 %s49, 1
      %p53 = scmp.eq.s32.totalorder %s15, 1
      %p54 = scmp.ne.s32.totalorder %s49, %s51
      %p55 = scmp.eq.s32.totalorder %s15, 0
      %p56 = por %p54, %p55
      %p57 = scmp.ne.s32.totalorder %s49, %s51
      %p58 = scmp.eq.s32.totalorder %s20, 1
      %p59 = por %p57, %p58
      %p60 = scmp.ne.s32.totalorder %s51, %s52
      %p61 = scmp.eq.s32.totalorder %s20, 0
      %p62 = por %p60, %p61
      %p63 = scmp.ne.s32.totalorder %s51, %s52
      %p64 = scmp.eq.s32.totalorder %s21, 1
      %p65 = por %p63, %p64
      %p67 = scmp.ne.s32.totalorder %s52, %s66
      %p68 = scmp.eq.s32.totalorder %s21, 0
      %p69 = por %p67, %p68
      %s71 = sadd.s32 %s70, 1
      %p74 = scmp.eq.s32.totalorder %s15, 1
      %p75 = scmp.ne.s32.totalorder %s70, %s72
      %p76 = scmp.eq.s32.totalorder %s15, 0
      %p77 = por %p75, %p76
      %p78 = scmp.ne.s32.totalorder %s70, %s72
      %p79 = scmp.eq.s32.totalorder %s20, 1
      %p80 = por %p78, %p79
      %p81 = scmp.ne.s32.totalorder %s72, %s73
      %p82 = scmp.eq.s32.totalorder %s20, 0
      %p83 = por %p81, %p82
      %p84 = scmp.ne.s32.totalorder %s72, %s73
      %p85 = scmp.eq.s32.totalorder %s21, 1
      %p86 = por %p84, %p85
      %p88 = scmp.ne.s32.totalorder %s73, %s87
      %p89 = scmp.eq.s32.totalorder %s21, 0
      %p90 = por %p88, %p89
      %s92 = sadd.s32 %s91, 1
      %p95 = scmp.eq.s32.totalorder %s15, 1
      %p96 = scmp.ne.s32.totalorder %s91, %s93
      %p97 = scmp.eq.s32.totalorder %s15, 0
      %p98 = por %p96, %p97
      %p99 = scmp.ne.s32.totalorder %s91, %s93
      %p100 = scmp.eq.s32.totalorder %s20, 1
      %p101 = por %p99, %p100
      %p102 = scmp.ne.s32.totalorder %s93, %s94
      %p103 = scmp.eq.s32.totalorder %s20, 0
      %p104 = por %p102, %p103
      %p105 = scmp.ne.s32.totalorder %s93, %s94
      %p106 = scmp.eq.s32.totalorder %s21, 1
      %p107 = por %p105, %p106
      %p109 = scmp.ne.s32.totalorder %s94, %s108
      %p110 = scmp.eq.s32.totalorder %s21, 0
      %p111 = por %p109, %p110
      %s113 = sadd.s32 %s112, 1
      %p116 = scmp.eq.s32.totalorder %s15, 1
      %p117 = scmp.ne.s32.totalorder %s112, %s114
      %p118 = scmp.eq.s32.totalorder %s15, 0
      %p119 = por %p117, %p118
      %p120 = scmp.ne.s32.totalorder %s112, %s114
      %p121 = scmp.eq.s32.totalorder %s20, 1
      %p122 = por %p120, %p121
      %p123 = scmp.ne.s32.totalorder %s114, %s115
      %p124 = scmp.eq.s32.totalorder %s20, 0
      %p125 = por %p123, %p124
      %p126 = scmp.ne.s32.totalorder %s114, %s115
      %p127 = scmp.eq.s32.totalorder %s21, 1
      %p128 = por %p126, %p127
      %p130 = scmp.ne.s32.totalorder %s115, %s129
      %p131 = scmp.eq.s32.totalorder %s21, 0
      %p132 = por %p130, %p131
      %s134 = sadd.s32 %s133, 1
      %p137 = scmp.eq.s32.totalorder %s15, 1
      %p138 = scmp.ne.s32.totalorder %s133, %s135
      %p139 = scmp.eq.s32.totalorder %s15, 0
      %p140 = por %p138, %p139
      %p141 = scmp.ne.s32.totalorder %s133, %s135
      %p142 = scmp.eq.s32.totalorder %s20, 1
      %p143 = por %p141, %p142
      %p144 = scmp.ne.s32.totalorder %s135, %s136
      %p145 = scmp.eq.s32.totalorder %s20, 0
      %p146 = por %p144, %p145
      %p147 = scmp.ne.s32.totalorder %s135, %s136
      %p148 = scmp.eq.s32.totalorder %s21, 1
      %p149 = por %p147, %p148
      %p151 = scmp.ne.s32.totalorder %s136, %s150
      %p152 = scmp.eq.s32.totalorder %s21, 0
      %p153 = por %p151, %p152
      %s154 = ssub.s32 %s15, %s22
      %p155 = scmp.eq.s32.totalorder %s154, 0
      %s157 = sadd.s32 %s156, 1
      %s158 = scalar_select %p155, %s156, %s157
      %p161 = pneg %p155
      %p162 = scmp.eq.s32.totalorder %s15, 1
      %p163 = por %p161, %p162
      %p164 = scmp.ne.s32.totalorder %s156, %s159
      %p165 = scmp.eq.s32.totalorder %s15, 0
      %p166 = por %p164, %p165
      %p167 = scmp.ne.s32.totalorder %s156, %s159
      %p168 = scmp.eq.s32.totalorder %s20, 1
      %p169 = por %p167, %p168
      %p170 = scmp.ne.s32.totalorder %s159, %s160
      %p171 = scmp.eq.s32.totalorder %s20, 0
      %p172 = por %p170, %p171
      %p173 = scmp.ne.s32.totalorder %s159, %s160
      %p174 = scmp.eq.s32.totalorder %s21, 1
      %p175 = por %p173, %p174
      %p177 = scmp.ne.s32.totalorder %s160, %s176
      %p178 = scmp.eq.s32.totalorder %s21, 0
      %p179 = por %p177, %p178
      %p180 = scmp.le.s32.totalorder 1, %s15
      %p181 = scmp.lt.s32.totalorder %s15, 3
      %p182 = pnand %p180, %p181
      %p183 = pneg %p182
      // Predicated region
      $region9: #{tpu_custom_call.1} parent=5 // pred_check
        _
      $region10: #{tpu_custom_call.1} parent=5 // pred_check_branch
        %185 = sbr.rel (%p182) target = $region12
      $region11: #{tpu_custom_call.1} parent=5 // pred_region
        %s186 = ssub.s32 %s15, 1
        // Predicated region
        $region13: #{tpu_custom_call.1} parent=11 // pred_check
          %p187 = pneg %p62
        $region14: #{tpu_custom_call.1} parent=11 // pred_check_branch
          %189 = sbr.rel (%p187) target = $region16
        $region15: #{tpu_custom_call.1} parent=11 // pred_region
          _
        $region16: #{tpu_custom_call.1} parent=11 // pred_fallthru
          _
        // Predicated region
        $region17: #{tpu_custom_call.1} parent=11 // pred_check
          %p190 = pneg %p83
        $region18: #{tpu_custom_call.1} parent=11 // pred_check_branch
          %192 = sbr.rel (%p190) target = $region20
        $region19: #{tpu_custom_call.1} parent=11 // pred_region
          _
        $region20: #{tpu_custom_call.1} parent=11 // pred_fallthru
          _
        // Predicated region
        $region21: #{tpu_custom_call.1} parent=11 // pred_check
          %p193 = pneg %p104
        $region22: #{tpu_custom_call.1} parent=11 // pred_check_branch
          %195 = sbr.rel (%p193) target = $region24
        $region23: #{tpu_custom_call.1} parent=11 // pred_region
          _
        $region24: #{tpu_custom_call.1} parent=11 // pred_fallthru
          _
        // Predicated region
        $region25: #{tpu_custom_call.1} parent=11 // pred_check
          %p196 = pneg %p125
        $region26: #{tpu_custom_call.1} parent=11 // pred_check_branch
          %198 = sbr.rel (%p196) target = $region28
        $region27: #{tpu_custom_call.1} parent=11 // pred_region
          _
        $region28: #{tpu_custom_call.1} parent=11 // pred_fallthru
          _
        // Predicated region
        $region29: #{tpu_custom_call.1} parent=11 // pred_check
          %p199 = pneg %p146
        $region30: #{tpu_custom_call.1} parent=11 // pred_check_branch
          %201 = sbr.rel (%p199) target = $region32
        $region31: #{tpu_custom_call.1} parent=11 // pred_region
          _
        $region32: #{tpu_custom_call.1} parent=11 // pred_fallthru
          _
      $region12: #{tpu_custom_call.1} parent=5 // pred_fallthru
        _
      %p202 = scmp.lt.s32.totalorder %s15, 2
      // Predicated region
      $region33: #{tpu_custom_call.1} parent=5 // pred_check
        %p203 = pneg %p202
      $region34: #{tpu_custom_call.1} parent=5 // pred_check_branch
        %205 = sbr.rel (%p203) target = $region36
      $region35: #{tpu_custom_call.1} parent=5 // pred_region
        // Predicated region
        $region37: #{tpu_custom_call.1} parent=35 // pred_check
          %p206 = pneg %p35
        $region38: #{tpu_custom_call.1} parent=35 // pred_check_branch
          %208 = sbr.rel (%p206) target = $region40
        $region39: #{tpu_custom_call.1} parent=35 // pred_region
          %p209 = scmp.lt.s32.totalorder %s15, 1
          %s210 = scalar_select %p209, %s15, 1
          %s211 = smul.addr %s210, 9
          %s212 = smul.addr %s211, 8
          %s213 = scalar_lea.vmem %s0, %s212
        $region40: #{tpu_custom_call.1} parent=35 // pred_fallthru
          _
      $region36: #{tpu_custom_call.1} parent=5 // pred_fallthru
        _
      %p214 = scmp.le.s32.totalorder 1, %s15
      %p215 = scmp.lt.s32.totalorder %s15, 3
      %p216 = pnand %p214, %p215
      %p217 = pneg %p216
      // Predicated region
      $region41: #{tpu_custom_call.1} parent=5 // pred_check
        _
      $region42: #{tpu_custom_call.1} parent=5 // pred_check_branch
        %219 = sbr.rel (%p216) target = $region44
      $region43: #{tpu_custom_call.1} parent=5 // pred_region
        %s220 = ssub.s32 %s15, 1
        %p221 = scmp.lt.s32.totalorder %s20, 1
        %s222 = scalar_select %p221, %s20, 1
        %s223 = smul.addr %s222, 9
        %s224 = smul.addr %s223, 8
        %s225 = scalar_lea.vmem %s0, %s224
        %p226 = pneg %p41
        %p227 = pneg %p38
        %p228 = pneg %p62
        %p229 = pneg %p59
        %p230 = pneg %p83
        %p231 = pneg %p80
        %p232 = pneg %p104
        %p233 = pneg %p101
        %p234 = pneg %p125
        %p235 = pneg %p122
        %p236 = pneg %p146
        %p237 = pneg %p143
        %p238 = pneg %p172
        %p239 = pneg %p169
        %s240 = sand.u32 %s159, 1
        %s241 = scalar_lea.sflag [#allocation4], %s240
        %s242 = sand.u32 %s159, 1
        %s243 = smul.addr %s242, 16
        %s244 = scalar_lea.vmem [#allocation3], %s243
        %p245 = scmp.lt.s32.totalorder %s20, 1
        %s246 = scalar_select %p245, %s20, 1
        %s247 = smul.addr %s246, 9
        %s248 = smul.addr %s247, 8
        %s249 = scalar_lea.vmem %s0, %s248
        %v250 = vld [vmem:[%s249] ss:$2 sm:$0xff]
        %s251 = scalar_lea.vmem %s249, 16
        %v252 = vld [vmem:[%s251] ss:$2 sm:$0xff]
        %s253 = scalar_lea.vmem %s249, 32
        %v254 = vld [vmem:[%s253] ss:$2 sm:$0xff]
        %s255 = scalar_lea.vmem %s249, 48
        %v256 = vld [vmem:[%s255] ss:$2 sm:$0xff]
        %s257 = scalar_lea.vmem %s249, 1
        %v258 = vld [vmem:[%s257] ss:$2 sm:$0xff]
        %s259 = scalar_lea.vmem %s249, 17
        %v260 = vld [vmem:[%s259] ss:$2 sm:$0xff]
        %s261 = scalar_lea.vmem %s249, 33
        %v262 = vld [vmem:[%s261] ss:$2 sm:$0xff]
        %s263 = scalar_lea.vmem %s249, 49
        %v264 = vld [vmem:[%s263] ss:$2 sm:$0xff]
        %s265 = scalar_lea.vmem %s249, 2
        %v266 = vld [vmem:[%s265] ss:$2 sm:$0xff]
        %s267 = scalar_lea.vmem %s249, 18
        %v268 = vld [vmem:[%s267] ss:$2 sm:$0xff]
        %s269 = scalar_lea.vmem %s249, 34
        %v270 = vld [vmem:[%s269] ss:$2 sm:$0xff]
        %s271 = scalar_lea.vmem %s249, 50
        %v272 = vld [vmem:[%s271] ss:$2 sm:$0xff]
        %s273 = scalar_lea.vmem %s249, 3
        %v274 = vld [vmem:[%s273] ss:$2 sm:$0xff]
        %s275 = scalar_lea.vmem %s249, 19
        %v276 = vld [vmem:[%s275] ss:$2 sm:$0xff]
        %s277 = scalar_lea.vmem %s249, 35
        %v278 = vld [vmem:[%s277] ss:$2 sm:$0xff]
        %s279 = scalar_lea.vmem %s249, 51
        %v280 = vld [vmem:[%s279] ss:$2 sm:$0xff]
        %s281 = scalar_lea.vmem %s249, 4
        %v282 = vld [vmem:[%s281] ss:$2 sm:$0xff]
        %s283 = scalar_lea.vmem %s249, 20
        %v284 = vld [vmem:[%s283] ss:$2 sm:$0xff]
        %s285 = scalar_lea.vmem %s249, 36
        %v286 = vld [vmem:[%s285] ss:$2 sm:$0xff]
        %s287 = scalar_lea.vmem %s249, 52
        %v288 = vld [vmem:[%s287] ss:$2 sm:$0xff]
        %293 = vrot.lane.b32.xlu0 %v258, 1
        %v294 = vpop.permute.xlu0 %293
        %295 = vrot.lane.b32.xlu0 %v260, 1
        %v296 = vpop.permute.xlu0 %295
        %297 = vrot.lane.b32.xlu0 %v262, 1
        %v298 = vpop.permute.xlu0 %297
        %299 = vrot.lane.b32.xlu0 %v264, 1
        %v300 = vpop.permute.xlu0 %299
        %309 = vrot.lane.b32.xlu0 %v266, 2
        %v310 = vpop.permute.xlu0 %309
        %311 = vrot.lane.b32.xlu0 %v268, 2
        %v312 = vpop.permute.xlu0 %311
        %313 = vrot.lane.b32.xlu0 %v270, 2
        %v314 = vpop.permute.xlu0 %313
        %315 = vrot.lane.b32.xlu0 %v272, 2
        %v316 = vpop.permute.xlu0 %315
        %325 = vrot.lane.b32.xlu0 %v274, 3
        %v326 = vpop.permute.xlu0 %325
        %327 = vrot.lane.b32.xlu0 %v276, 3
        %v328 = vpop.permute.xlu0 %327
        %329 = vrot.lane.b32.xlu0 %v278, 3
        %v330 = vpop.permute.xlu0 %329
        %331 = vrot.lane.b32.xlu0 %v280, 3
        %v332 = vpop.permute.xlu0 %331
        %341 = vrot.lane.b32.xlu0 %v282, 4
        %v342 = vpop.permute.xlu0 %341
        %343 = vrot.lane.b32.xlu0 %v284, 4
        %v344 = vpop.permute.xlu0 %343
        %345 = vrot.lane.b32.xlu0 %v286, 4
        %v346 = vpop.permute.xlu0 %345
        %347 = vrot.lane.b32.xlu0 %v288, 4
        %v348 = vpop.permute.xlu0 %347
        %vm353 = vcmask 7168
        %v354 = vsel %vm353, %v250, %v294
        %v355 = vsel %vm353, %v252, %v296
        %v356 = vsel %vm353, %v254, %v298
        %v357 = vsel %vm353, %v256, %v300
        %vm358 = vcmask 15360
        %v359 = vsel %vm358, %v354, %v310
        %v360 = vsel %vm358, %v355, %v312
        %v361 = vsel %vm358, %v356, %v314
        %v362 = vsel %vm358, %v357, %v316
        %vm363 = vcmask 23552
        %v364 = vsel %vm363, %v359, %v326
        %v365 = vsel %vm363, %v360, %v328
        %v366 = vsel %vm363, %v361, %v330
        %v367 = vsel %vm363, %v362, %v332
        %vm368 = vcmask 31744
        %v369 = vsel %vm368, %v364, %v342
        %v370 = vsel %vm368, %v365, %v344
        %v371 = vsel %vm368, %v366, %v346
        %v372 = vsel %vm368, %v367, %v348
        %v373 = vld [vmem:[%s1] sm:$0x1f]
        %v374 = vld [vmem:[%s2] sm:$0x1]
        %v376 = vperm.slane %v374, 0
        %vm378 = vcmask 39936
        %v380 = vsel %vm378, %v369, 0
        %v383 = vsel %vm378, %v370, 0
        %v386 = vsel %vm378, %v371, 0
        %v389 = vsel %vm378, %v372, 0
        %vm391 = vcmask 1044480
        %v393 = vsel %vm391, %v373, 0
        %395 = vmatpush.msra.mxu0 0.0
        %396 = vmatpush.msra.mxu0 0.0
        %397 = vmatpush.msra.mxu0 0.0
        %398 = vmatpush.msra.mxu0 0.0
        %399 = vmatpush.msra.mxu0 0.0
        %400 = vmatpush.msra.mxu0 0.0
        %401 = vmatpush.msra.mxu0 0.0
        %402 = vmatpush.msra.mxu0 0.0
        %403 = vmatpush.msra.mxu0 0.0
        %404 = vmatpush.msra.mxu0 0.0
        %405 = vmatpush.msra.mxu0 0.0
        %406 = vmatpush.msra.mxu0 0.0
        %407 = vmatpush.msra.mxu0 0.0
        %408 = vmatpush.msra.mxu0 0.0
        %409 = vmatpush.msra.mxu0 0.0
        %v410 = vand.u32 %v393, 4294901760
        %411 = vmatpush.msra.mxu0 %v410
        %v412 = vand.u32 %v380, 4294901760
        %v413 = vsub.f32 %v380, %v412
        %v414 = vand.u32 %v413, 4294901760
        %v415 = vsub.f32 %v413, %v414
        %v416 = vand.u32 %v415, 4294901760
        %417 = vmatmul.f32.gmra.mxu0 %v416
        %v418 = vpop.f32.mrf.mxu0
        %v419 = vadd.f32 %v376, %v418
        %v420 = vand.u32 %v383, 4294901760
        %v421 = vsub.f32 %v383, %v420
        %v422 = vand.u32 %v421, 4294901760
        %v423 = vsub.f32 %v421, %v422
        %v424 = vand.u32 %v423, 4294901760
        %425 = vmatmul.f32.gmra.mxu0 %v424
        %v426 = vpop.f32.mrf.mxu0
        %v427 = vadd.f32 %v376, %v426
        %v428 = vand.u32 %v386, 4294901760
        %v429 = vsub.f32 %v386, %v428
        %v430 = vand.u32 %v429, 4294901760
        %v431 = vsub.f32 %v429, %v430
        %v432 = vand.u32 %v431, 4294901760
        %433 = vmatmul.f32.gmra.mxu0 %v432
        %v434 = vpop.f32.mrf.mxu0
        %v435 = vadd.f32 %v376, %v434
        %v436 = vand.u32 %v389, 4294901760
        %v437 = vsub.f32 %v389, %v436
        %v438 = vand.u32 %v437, 4294901760
        %v439 = vsub.f32 %v437, %v438
        %v440 = vand.u32 %v439, 4294901760
        %441 = vmatmul.f32.gmra.mxu0 %v440
        %v442 = vpop.f32.mrf.mxu0
        %v443 = vadd.f32 %v376, %v442
        %444 = vdwg.mxu0
        %445 = vmatpush.msra.mxu0 0.0
        %446 = vmatpush.msra.mxu0 0.0
        %447 = vmatpush.msra.mxu0 0.0
        %448 = vmatpush.msra.mxu0 0.0
        %449 = vmatpush.msra.mxu0 0.0
        %450 = vmatpush.msra.mxu0 0.0
        %451 = vmatpush.msra.mxu0 0.0
        %452 = vmatpush.msra.mxu0 0.0
        %453 = vmatpush.msra.mxu0 0.0
        %454 = vmatpush.msra.mxu0 0.0
        %455 = vmatpush.msra.mxu0 0.0
        %456 = vmatpush.msra.mxu0 0.0
        %457 = vmatpush.msra.mxu0 0.0
        %458 = vmatpush.msra.mxu0 0.0
        %459 = vmatpush.msra.mxu0 0.0
        %v460 = vand.u32 %v393, 4294901760
        %v461 = vsub.f32 %v393, %v460
        %v462 = vand.u32 %v461, 4294901760
        %v463 = vsub.f32 %v461, %v462
        %v464 = vand.u32 %v463, 4294901760
        %465 = vmatpush.msra.mxu0 %v464
        %v466 = vand.u32 %v380, 4294901760
        %467 = vmatmul.f32.gmra.mxu0 %v466
        %v468 = vpop.f32.mrf.mxu0
        %v469 = vadd.f32 %v419, %v468
        %v470 = vand.u32 %v383, 4294901760
        %471 = vmatmul.f32.gmra.mxu0 %v470
        %v472 = vpop.f32.mrf.mxu0
        %v473 = vadd.f32 %v427, %v472
        %v474 = vand.u32 %v386, 4294901760
        %475 = vmatmul.f32.gmra.mxu0 %v474
        %v476 = vpop.f32.mrf.mxu0
        %v477 = vadd.f32 %v435, %v476
        %v478 = vand.u32 %v389, 4294901760
        %479 = vmatmul.f32.gmra.mxu0 %v478
        %v480 = vpop.f32.mrf.mxu0
        %v481 = vadd.f32 %v443, %v480
        %482 = vdwg.mxu0
        %483 = vmatpush.msra.mxu0 0.0
        %484 = vmatpush.msra.mxu0 0.0
        %485 = vmatpush.msra.mxu0 0.0
        %486 = vmatpush.msra.mxu0 0.0
        %487 = vmatpush.msra.mxu0 0.0
        %488 = vmatpush.msra.mxu0 0.0
        %489 = vmatpush.msra.mxu0 0.0
        %490 = vmatpush.msra.mxu0 0.0
        %491 = vmatpush.msra.mxu0 0.0
        %492 = vmatpush.msra.mxu0 0.0
        %493 = vmatpush.msra.mxu0 0.0
        %494 = vmatpush.msra.mxu0 0.0
        %495 = vmatpush.msra.mxu0 0.0
        %496 = vmatpush.msra.mxu0 0.0
        %497 = vmatpush.msra.mxu0 0.0
        %v498 = vand.u32 %v393, 4294901760
        %v499 = vsub.f32 %v393, %v498
        %500 = vmatpush.msra.mxu0 %v499
        %v501 = vand.u32 %v380, 4294901760
        %v502 = vsub.f32 %v380, %v501
        %503 = vmatmul.f32.gmra.mxu0 %v502
        %v504 = vpop.f32.mrf.mxu0
        %v505 = vadd.f32 %v469, %v504
        %v506 = vand.u32 %v383, 4294901760
        %v507 = vsub.f32 %v383, %v506
        %508 = vmatmul.f32.gmra.mxu0 %v507
        %v509 = vpop.f32.mrf.mxu0
        %v510 = vadd.f32 %v473, %v509
        %v511 = vand.u32 %v386, 4294901760
        %v512 = vsub.f32 %v386, %v511
        %513 = vmatmul.f32.gmra.mxu0 %v512
        %v514 = vpop.f32.mrf.mxu0
        %v515 = vadd.f32 %v477, %v514
        %v516 = vand.u32 %v389, 4294901760
        %v517 = vsub.f32 %v389, %v516
        %518 = vmatmul.f32.gmra.mxu0 %v517
        %v519 = vpop.f32.mrf.mxu0
        %v520 = vadd.f32 %v481, %v519
        %521 = vdwg.mxu0
        %522 = vmatpush.msra.mxu0 0.0
        %523 = vmatpush.msra.mxu0 0.0
        %524 = vmatpush.msra.mxu0 0.0
        %525 = vmatpush.msra.mxu0 0.0
        %526 = vmatpush.msra.mxu0 0.0
        %527 = vmatpush.msra.mxu0 0.0
        %528 = vmatpush.msra.mxu0 0.0
        %529 = vmatpush.msra.mxu0 0.0
        %530 = vmatpush.msra.mxu0 0.0
        %531 = vmatpush.msra.mxu0 0.0
        %532 = vmatpush.msra.mxu0 0.0
        %533 = vmatpush.msra.mxu0 0.0
        %534 = vmatpush.msra.mxu0 0.0
        %535 = vmatpush.msra.mxu0 0.0
        %536 = vmatpush.msra.mxu0 0.0
        %v537 = vand.u32 %v393, 4294901760
        %538 = vmatpush.msra.mxu0 %v537
        %v539 = vand.u32 %v380, 4294901760
        %v540 = vsub.f32 %v380, %v539
        %v541 = vand.u32 %v540, 4294901760
        %542 = vmatmul.f32.gmra.mxu0 %v541
        %v543 = vpop.f32.mrf.mxu0
        %v544 = vadd.f32 %v505, %v543
        %v545 = vand.u32 %v383, 4294901760
        %v546 = vsub.f32 %v383, %v545
        %v547 = vand.u32 %v546, 4294901760
        %548 = vmatmul.f32.gmra.mxu0 %v547
        %v549 = vpop.f32.mrf.mxu0
        %v550 = vadd.f32 %v510, %v549
        %v551 = vand.u32 %v386, 4294901760
        %v552 = vsub.f32 %v386, %v551
        %v553 = vand.u32 %v552, 4294901760
        %554 = vmatmul.f32.gmra.mxu0 %v553
        %v555 = vpop.f32.mrf.mxu0
        %v556 = vadd.f32 %v515, %v555
        %v557 = vand.u32 %v389, 4294901760
        %v558 = vsub.f32 %v389, %v557
        %v559 = vand.u32 %v558, 4294901760
        %560 = vmatmul.f32.gmra.mxu0 %v559
        %v561 = vpop.f32.mrf.mxu0
        %v562 = vadd.f32 %v520, %v561
        %563 = vdwg.mxu0
        %564 = vmatpush.msra.mxu0 0.0
        %565 = vmatpush.msra.mxu0 0.0
        %566 = vmatpush.msra.mxu0 0.0
        %567 = vmatpush.msra.mxu0 0.0
        %568 = vmatpush.msra.mxu0 0.0
        %569 = vmatpush.msra.mxu0 0.0
        %570 = vmatpush.msra.mxu0 0.0
        %571 = vmatpush.msra.mxu0 0.0
        %572 = vmatpush.msra.mxu0 0.0
        %573 = vmatpush.msra.mxu0 0.0
        %574 = vmatpush.msra.mxu0 0.0
        %575 = vmatpush.msra.mxu0 0.0
        %576 = vmatpush.msra.mxu0 0.0
        %577 = vmatpush.msra.mxu0 0.0
        %578 = vmatpush.msra.mxu0 0.0
        %v579 = vand.u32 %v393, 4294901760
        %v580 = vsub.f32 %v393, %v579
        %v581 = vand.u32 %v580, 4294901760
        %582 = vmatpush.msra.mxu0 %v581
        %v583 = vand.u32 %v380, 4294901760
        %584 = vmatmul.f32.gmra.mxu0 %v583
        %v585 = vpop.f32.mrf.mxu0
        %v586 = vadd.f32 %v544, %v585
        %v587 = vand.u32 %v383, 4294901760
        %588 = vmatmul.f32.gmra.mxu0 %v587
        %v589 = vpop.f32.mrf.mxu0
        %v590 = vadd.f32 %v550, %v589
        %v591 = vand.u32 %v386, 4294901760
        %592 = vmatmul.f32.gmra.mxu0 %v591
        %v593 = vpop.f32.mrf.mxu0
        %v594 = vadd.f32 %v556, %v593
        %v595 = vand.u32 %v389, 4294901760
        %596 = vmatmul.f32.gmra.mxu0 %v595
        %v597 = vpop.f32.mrf.mxu0
        %v598 = vadd.f32 %v562, %v597
        %599 = vdwg.mxu0
        %600 = vmatpush.msra.mxu0 0.0
        %601 = vmatpush.msra.mxu0 0.0
        %602 = vmatpush.msra.mxu0 0.0
        %603 = vmatpush.msra.mxu0 0.0
        %604 = vmatpush.msra.mxu0 0.0
        %605 = vmatpush.msra.mxu0 0.0
        %606 = vmatpush.msra.mxu0 0.0
        %607 = vmatpush.msra.mxu0 0.0
        %608 = vmatpush.msra.mxu0 0.0
        %609 = vmatpush.msra.mxu0 0.0
        %610 = vmatpush.msra.mxu0 0.0
        %611 = vmatpush.msra.mxu0 0.0
        %612 = vmatpush.msra.mxu0 0.0
        %613 = vmatpush.msra.mxu0 0.0
        %614 = vmatpush.msra.mxu0 0.0
        %v615 = vand.u32 %v393, 4294901760
        %616 = vmatpush.msra.mxu0 %v615
        %v617 = vand.u32 %v380, 4294901760
        %618 = vmatmul.f32.gmra.mxu0 %v617
        %v619 = vpop.f32.mrf.mxu0
        %v620 = vadd.f32 %v586, %v619
        %v621 = vand.u32 %v383, 4294901760
        %622 = vmatmul.f32.gmra.mxu0 %v621
        %v623 = vpop.f32.mrf.mxu0
        %v624 = vadd.f32 %v590, %v623
        %v625 = vand.u32 %v386, 4294901760
        %626 = vmatmul.f32.gmra.mxu0 %v625
        %v627 = vpop.f32.mrf.mxu0
        %v628 = vadd.f32 %v594, %v627
        %v629 = vand.u32 %v389, 4294901760
        %630 = vmatmul.f32.gmra.mxu0 %v629
        %v631 = vpop.f32.mrf.mxu0
        %v632 = vadd.f32 %v598, %v631
        %633 = vdwg.mxu0
        %v634 = vmax.f32 %v620, 0.0
        %v635 = vmax.f32 %v624, 0.0
        %v636 = vmax.f32 %v628, 0.0
        %v637 = vmax.f32 %v632, 0.0
        %s638 = scalar_lea.vmem %s249, 5
        %v639 = vld [vmem:[%s638] ss:$2 sm:$0xff]
        %s640 = scalar_lea.vmem %s249, 21
        %v641 = vld [vmem:[%s640] ss:$2 sm:$0xff]
        %s642 = scalar_lea.vmem %s249, 37
        %v643 = vld [vmem:[%s642] ss:$2 sm:$0xff]
        %s644 = scalar_lea.vmem %s249, 53
        %v645 = vld [vmem:[%s644] ss:$2 sm:$0xff]
        %646 = vrot.lane.b32.xlu0 %v266, 1
        %v647 = vpop.permute.xlu0 %646
        %648 = vrot.lane.b32.xlu0 %v268, 1
        %v649 = vpop.permute.xlu0 %648
        %650 = vrot.lane.b32.xlu0 %v270, 1
        %v651 = vpop.permute.xlu0 %650
        %652 = vrot.lane.b32.xlu0 %v272, 1
        %v653 = vpop.permute.xlu0 %652
        %658 = vrot.lane.b32.xlu0 %v274, 2
        %v659 = vpop.permute.xlu0 %658
        %660 = vrot.lane.b32.xlu0 %v276, 2
        %v661 = vpop.permute.xlu0 %660
        %662 = vrot.lane.b32.xlu0 %v278, 2
        %v663 = vpop.permute.xlu0 %662
        %664 = vrot.lane.b32.xlu0 %v280, 2
        %v665 = vpop.permute.xlu0 %664
        %670 = vrot.lane.b32.xlu0 %v282, 3
        %v671 = vpop.permute.xlu0 %670
        %672 = vrot.lane.b32.xlu0 %v284, 3
        %v673 = vpop.permute.xlu0 %672
        %674 = vrot.lane.b32.xlu0 %v286, 3
        %v675 = vpop.permute.xlu0 %674
        %676 = vrot.lane.b32.xlu0 %v288, 3
        %v677 = vpop.permute.xlu0 %676
        %686 = vrot.lane.b32.xlu0 %v639, 4
        %v687 = vpop.permute.xlu0 %686
        %688 = vrot.lane.b32.xlu0 %v641, 4
        %v689 = vpop.permute.xlu0 %688
        %690 = vrot.lane.b32.xlu0 %v643, 4
        %v691 = vpop.permute.xlu0 %690
        %692 = vrot.lane.b32.xlu0 %v645, 4
        %v693 = vpop.permute.xlu0 %692
        %v698 = vsel %vm353, %v258, %v647
        %v699 = vsel %vm353, %v260, %v649
        %v700 = vsel %vm353, %v262, %v651
        %v701 = vsel %vm353, %v264, %v653
        %v702 = vsel %vm358, %v698, %v659
        %v703 = vsel %vm358, %v699, %v661
        %v704 = vsel %vm358, %v700, %v663
        %v705 = vsel %vm358, %v701, %v665
        %v706 = vsel %vm363, %v702, %v671
        %v707 = vsel %vm363, %v703, %v673
        %v708 = vsel %vm363, %v704, %v675
        %v709 = vsel %vm363, %v705, %v677
        %v710 = vsel %vm368, %v706, %v687
        %v711 = vsel %vm368, %v707, %v689
        %v712 = vsel %vm368, %v708, %v691
        %v713 = vsel %vm368, %v709, %v693
        %v715 = vsel %vm378, %v710, 0
        %v718 = vsel %vm378, %v711, 0
        %v721 = vsel %vm378, %v712, 0
        %v724 = vsel %vm378, %v713, 0
        %726 = vmatpush.msra.mxu0 0.0
        %727 = vmatpush.msra.mxu0 0.0
        %728 = vmatpush.msra.mxu0 0.0
        %729 = vmatpush.msra.mxu0 0.0
        %730 = vmatpush.msra.mxu0 0.0
        %731 = vmatpush.msra.mxu0 0.0
        %732 = vmatpush.msra.mxu0 0.0
        %733 = vmatpush.msra.mxu0 0.0
        %734 = vmatpush.msra.mxu0 0.0
        %735 = vmatpush.msra.mxu0 0.0
        %736 = vmatpush.msra.mxu0 0.0
        %737 = vmatpush.msra.mxu0 0.0
        %738 = vmatpush.msra.mxu0 0.0
        %739 = vmatpush.msra.mxu0 0.0
        %740 = vmatpush.msra.mxu0 0.0
        %v741 = vand.u32 %v393, 4294901760
        %742 = vmatpush.msra.mxu0 %v741
        %v743 = vand.u32 %v715, 4294901760
        %v744 = vsub.f32 %v715, %v743
        %v745 = vand.u32 %v744, 4294901760
        %v746 = vsub.f32 %v744, %v745
        %v747 = vand.u32 %v746, 4294901760
        %748 = vmatmul.f32.gmra.mxu0 %v747
        %v749 = vpop.f32.mrf.mxu0
        %v750 = vadd.f32 %v376, %v749
        %v751 = vand.u32 %v718, 4294901760
        %v752 = vsub.f32 %v718, %v751
        %v753 = vand.u32 %v752, 4294901760
        %v754 = vsub.f32 %v752, %v753
        %v755 = vand.u32 %v754, 4294901760
        %756 = vmatmul.f32.gmra.mxu0 %v755
        %v757 = vpop.f32.mrf.mxu0
        %v758 = vadd.f32 %v376, %v757
        %v759 = vand.u32 %v721, 4294901760
        %v760 = vsub.f32 %v721, %v759
        %v761 = vand.u32 %v760, 4294901760
        %v762 = vsub.f32 %v760, %v761
        %v763 = vand.u32 %v762, 4294901760
        %764 = vmatmul.f32.gmra.mxu0 %v763
        %v765 = vpop.f32.mrf.mxu0
        %v766 = vadd.f32 %v376, %v765
        %v767 = vand.u32 %v724, 4294901760
        %v768 = vsub.f32 %v724, %v767
        %v769 = vand.u32 %v768, 4294901760
        %v770 = vsub.f32 %v768, %v769
        %v771 = vand.u32 %v770, 4294901760
        %772 = vmatmul.f32.gmra.mxu0 %v771
        %v773 = vpop.f32.mrf.mxu0
        %v774 = vadd.f32 %v376, %v773
        %775 = vdwg.mxu0
        %776 = vmatpush.msra.mxu0 0.0
        %777 = vmatpush.msra.mxu0 0.0
        %778 = vmatpush.msra.mxu0 0.0
        %779 = vmatpush.msra.mxu0 0.0
        %780 = vmatpush.msra.mxu0 0.0
        %781 = vmatpush.msra.mxu0 0.0
        %782 = vmatpush.msra.mxu0 0.0
        %783 = vmatpush.msra.mxu0 0.0
        %784 = vmatpush.msra.mxu0 0.0
        %785 = vmatpush.msra.mxu0 0.0
        %786 = vmatpush.msra.mxu0 0.0
        %787 = vmatpush.msra.mxu0 0.0
        %788 = vmatpush.msra.mxu0 0.0
        %789 = vmatpush.msra.mxu0 0.0
        %790 = vmatpush.msra.mxu0 0.0
        %v791 = vand.u32 %v393, 4294901760
        %v792 = vsub.f32 %v393, %v791
        %v793 = vand.u32 %v792, 4294901760
        %v794 = vsub.f32 %v792, %v793
        %v795 = vand.u32 %v794, 4294901760
        %796 = vmatpush.msra.mxu0 %v795
        %v797 = vand.u32 %v715, 4294901760
        %798 = vmatmul.f32.gmra.mxu0 %v797
        %v799 = vpop.f32.mrf.mxu0
        %v800 = vadd.f32 %v750, %v799
        %v801 = vand.u32 %v718, 4294901760
        %802 = vmatmul.f32.gmra.mxu0 %v801
        %v803 = vpop.f32.mrf.mxu0
        %v804 = vadd.f32 %v758, %v803
        %v805 = vand.u32 %v721, 4294901760
        %806 = vmatmul.f32.gmra.mxu0 %v805
        %v807 = vpop.f32.mrf.mxu0
        %v808 = vadd.f32 %v766, %v807
        %v809 = vand.u32 %v724, 4294901760
        %810 = vmatmul.f32.gmra.mxu0 %v809
        %v811 = vpop.f32.mrf.mxu0
        %v812 = vadd.f32 %v774, %v811
        %813 = vdwg.mxu0
        %814 = vmatpush.msra.mxu0 0.0
        %815 = vmatpush.msra.mxu0 0.0
        %816 = vmatpush.msra.mxu0 0.0
        %817 = vmatpush.msra.mxu0 0.0
        %818 = vmatpush.msra.mxu0 0.0
        %819 = vmatpush.msra.mxu0 0.0
        %820 = vmatpush.msra.mxu0 0.0
        %821 = vmatpush.msra.mxu0 0.0
        %822 = vmatpush.msra.mxu0 0.0
        %823 = vmatpush.msra.mxu0 0.0
        %824 = vmatpush.msra.mxu0 0.0
        %825 = vmatpush.msra.mxu0 0.0
        %826 = vmatpush.msra.mxu0 0.0
        %827 = vmatpush.msra.mxu0 0.0
        %828 = vmatpush.msra.mxu0 0.0
        %v829 = vand.u32 %v393, 4294901760
        %v830 = vsub.f32 %v393, %v829
        %831 = vmatpush.msra.mxu0 %v830
        %v832 = vand.u32 %v715, 4294901760
        %v833 = vsub.f32 %v715, %v832
        %834 = vmatmul.f32.gmra.mxu0 %v833
        %v835 = vpop.f32.mrf.mxu0
        %v836 = vadd.f32 %v800, %v835
        %v837 = vand.u32 %v718, 4294901760
        %v838 = vsub.f32 %v718, %v837
        %839 = vmatmul.f32.gmra.mxu0 %v838
        %v840 = vpop.f32.mrf.mxu0
        %v841 = vadd.f32 %v804, %v840
        %v842 = vand.u32 %v721, 4294901760
        %v843 = vsub.f32 %v721, %v842
        %844 = vmatmul.f32.gmra.mxu0 %v843
        %v845 = vpop.f32.mrf.mxu0
        %v846 = vadd.f32 %v808, %v845
        %v847 = vand.u32 %v724, 4294901760
        %v848 = vsub.f32 %v724, %v847
        %849 = vmatmul.f32.gmra.mxu0 %v848
        %v850 = vpop.f32.mrf.mxu0
        %v851 = vadd.f32 %v812, %v850
        %852 = vdwg.mxu0
        %853 = vmatpush.msra.mxu0 0.0
        %854 = vmatpush.msra.mxu0 0.0
        %855 = vmatpush.msra.mxu0 0.0
        %856 = vmatpush.msra.mxu0 0.0
        %857 = vmatpush.msra.mxu0 0.0
        %858 = vmatpush.msra.mxu0 0.0
        %859 = vmatpush.msra.mxu0 0.0
        %860 = vmatpush.msra.mxu0 0.0
        %861 = vmatpush.msra.mxu0 0.0
        %862 = vmatpush.msra.mxu0 0.0
        %863 = vmatpush.msra.mxu0 0.0
        %864 = vmatpush.msra.mxu0 0.0
        %865 = vmatpush.msra.mxu0 0.0
        %866 = vmatpush.msra.mxu0 0.0
        %867 = vmatpush.msra.mxu0 0.0
        %v868 = vand.u32 %v393, 4294901760
        %869 = vmatpush.msra.mxu0 %v868
        %v870 = vand.u32 %v715, 4294901760
        %v871 = vsub.f32 %v715, %v870
        %v872 = vand.u32 %v871, 4294901760
        %873 = vmatmul.f32.gmra.mxu0 %v872
        %v874 = vpop.f32.mrf.mxu0
        %v875 = vadd.f32 %v836, %v874
        %v876 = vand.u32 %v718, 4294901760
        %v877 = vsub.f32 %v718, %v876
        %v878 = vand.u32 %v877, 4294901760
        %879 = vmatmul.f32.gmra.mxu0 %v878
        %v880 = vpop.f32.mrf.mxu0
        %v881 = vadd.f32 %v841, %v880
        %v882 = vand.u32 %v721, 4294901760
        %v883 = vsub.f32 %v721, %v882
        %v884 = vand.u32 %v883, 4294901760
        %885 = vmatmul.f32.gmra.mxu0 %v884
        %v886 = vpop.f32.mrf.mxu0
        %v887 = vadd.f32 %v846, %v886
        %v888 = vand.u32 %v724, 4294901760
        %v889 = vsub.f32 %v724, %v888
        %v890 = vand.u32 %v889, 4294901760
        %891 = vmatmul.f32.gmra.mxu0 %v890
        %v892 = vpop.f32.mrf.mxu0
        %v893 = vadd.f32 %v851, %v892
        %894 = vdwg.mxu0
        %895 = vmatpush.msra.mxu0 0.0
        %896 = vmatpush.msra.mxu0 0.0
        %897 = vmatpush.msra.mxu0 0.0
        %898 = vmatpush.msra.mxu0 0.0
        %899 = vmatpush.msra.mxu0 0.0
        %900 = vmatpush.msra.mxu0 0.0
        %901 = vmatpush.msra.mxu0 0.0
        %902 = vmatpush.msra.mxu0 0.0
        %903 = vmatpush.msra.mxu0 0.0
        %904 = vmatpush.msra.mxu0 0.0
        %905 = vmatpush.msra.mxu0 0.0
        %906 = vmatpush.msra.mxu0 0.0
        %907 = vmatpush.msra.mxu0 0.0
        %908 = vmatpush.msra.mxu0 0.0
        %909 = vmatpush.msra.mxu0 0.0
        %v910 = vand.u32 %v393, 4294901760
        %v911 = vsub.f32 %v393, %v910
        %v912 = vand.u32 %v911, 4294901760
        %913 = vmatpush.msra.mxu0 %v912
        %v914 = vand.u32 %v715, 4294901760
        %915 = vmatmul.f32.gmra.mxu0 %v914
        %v916 = vpop.f32.mrf.mxu0
        %v917 = vadd.f32 %v875, %v916
        %v918 = vand.u32 %v718, 4294901760
        %919 = vmatmul.f32.gmra.mxu0 %v918
        %v920 = vpop.f32.mrf.mxu0
        %v921 = vadd.f32 %v881, %v920
        %v922 = vand.u32 %v721, 4294901760
        %923 = vmatmul.f32.gmra.mxu0 %v922
        %v924 = vpop.f32.mrf.mxu0
        %v925 = vadd.f32 %v887, %v924
        %v926 = vand.u32 %v724, 4294901760
        %927 = vmatmul.f32.gmra.mxu0 %v926
        %v928 = vpop.f32.mrf.mxu0
        %v929 = vadd.f32 %v893, %v928
        %930 = vdwg.mxu0
        %931 = vmatpush.msra.mxu0 0.0
        %932 = vmatpush.msra.mxu0 0.0
        %933 = vmatpush.msra.mxu0 0.0
        %934 = vmatpush.msra.mxu0 0.0
        %935 = vmatpush.msra.mxu0 0.0
        %936 = vmatpush.msra.mxu0 0.0
        %937 = vmatpush.msra.mxu0 0.0
        %938 = vmatpush.msra.mxu0 0.0
        %939 = vmatpush.msra.mxu0 0.0
        %940 = vmatpush.msra.mxu0 0.0
        %941 = vmatpush.msra.mxu0 0.0
        %942 = vmatpush.msra.mxu0 0.0
        %943 = vmatpush.msra.mxu0 0.0
        %944 = vmatpush.msra.mxu0 0.0
        %945 = vmatpush.msra.mxu0 0.0
        %v946 = vand.u32 %v393, 4294901760
        %947 = vmatpush.msra.mxu0 %v946
        %v948 = vand.u32 %v715, 4294901760
        %949 = vmatmul.f32.gmra.mxu0 %v948
        %v950 = vpop.f32.mrf.mxu0
        %v951 = vadd.f32 %v917, %v950
        %v952 = vand.u32 %v718, 4294901760
        %953 = vmatmul.f32.gmra.mxu0 %v952
        %v954 = vpop.f32.mrf.mxu0
        %v955 = vadd.f32 %v921, %v954
        %v956 = vand.u32 %v721, 4294901760
        %957 = vmatmul.f32.gmra.mxu0 %v956
        %v958 = vpop.f32.mrf.mxu0
        %v959 = vadd.f32 %v925, %v958
        %v960 = vand.u32 %v724, 4294901760
        %961 = vmatmul.f32.gmra.mxu0 %v960
        %v962 = vpop.f32.mrf.mxu0
        %v963 = vadd.f32 %v929, %v962
        %964 = vdwg.mxu0
        %v965 = vmax.f32 %v951, 0.0
        %v966 = vmax.f32 %v955, 0.0
        %v967 = vmax.f32 %v959, 0.0
        %v968 = vmax.f32 %v963, 0.0
        %v969 = vmax.f32 %v634, %v965
        %v970 = vmax.f32 %v635, %v966
        %v971 = vmax.f32 %v636, %v967
        %v972 = vmax.f32 %v637, %v968
        %vm973 = vcmask 123904
        %974 = vst.msk [vmem:[#allocation2] sm:$0x3] %vm973, 0.0
        %975 = vst.msk [vmem:[#allocation2 + $0x22] sm:$0x3] %vm973, 0.0
        %vm976 = vcmask 130048
        %977 = vst.msk [vmem:[#allocation2 + $0x2] sm:$0xff] %vm976, %v969
        %978 = vst.msk [vmem:[#allocation2 + $0xa] sm:$0xff] %vm976, %v970
        %979 = vst.msk [vmem:[#allocation2 + $0x12] sm:$0xff] %vm976, %v971
        %980 = vst.msk [vmem:[#allocation2 + $0x1a] sm:$0xff] %vm976, %v972
        %v981 = vld [vmem:[#allocation2] ss:$2 sm:$0xff]
        %s982 = scalar_lea.vmem [#allocation2], 16
        %v983 = vld [vmem:[%s982] ss:$2 sm:$0xff]
        %s984 = scalar_lea.vmem [#allocation2], 1
        %v985 = vld [vmem:[%s984] ss:$2 sm:$0xff]
        %s986 = scalar_lea.vmem [#allocation2], 17
        %v987 = vld [vmem:[%s986] ss:$2 sm:$0xff]
        %s988 = scalar_lea.vmem [#allocation2], 2
        %v989 = vld [vmem:[%s988] ss:$2 sm:$0xff]
        %s990 = scalar_lea.vmem [#allocation2], 18
        %v991 = vld [vmem:[%s990] ss:$2 sm:$0xff]
        %s992 = scalar_lea.vmem [#allocation2], 3
        %v993 = vld [vmem:[%s992] ss:$2 sm:$0xff]
        %s994 = scalar_lea.vmem [#allocation2], 19
        %v995 = vld [vmem:[%s994] ss:$2 sm:$0xff]
        %s996 = scalar_lea.vmem [#allocation2], 4
        %v997 = vld [vmem:[%s996] ss:$2 sm:$0xff]
        %s998 = scalar_lea.vmem [#allocation2], 20
        %v999 = vld [vmem:[%s998] ss:$2 sm:$0xff]
        %1002 = vrot.lane.b32.xlu0 %v985, 16
        %v1003 = vpop.permute.xlu0 %1002
        %1004 = vrot.lane.b32.xlu0 %v987, 16
        %v1005 = vpop.permute.xlu0 %1004
        %1010 = vrot.lane.b32.xlu0 %v989, 32
        %v1011 = vpop.permute.xlu0 %1010
        %1012 = vrot.lane.b32.xlu0 %v991, 32
        %v1013 = vpop.permute.xlu0 %1012
        %1018 = vrot.lane.b32.xlu0 %v993, 48
        %v1019 = vpop.permute.xlu0 %1018
        %1020 = vrot.lane.b32.xlu0 %v995, 48
        %v1021 = vpop.permute.xlu0 %1020
        %1026 = vrot.lane.b32.xlu0 %v997, 64
        %v1027 = vpop.permute.xlu0 %1026
        %1028 = vrot.lane.b32.xlu0 %v999, 64
        %v1029 = vpop.permute.xlu0 %1028
        %v1032 = vsel %vm976, %v981, %v1003
        %v1033 = vsel %vm976, %v983, %v1005
        %vm1034 = vcmask 261120
        %v1035 = vsel %vm1034, %v1032, %v1011
        %v1036 = vsel %vm1034, %v1033, %v1013
        %vm1037 = vcmask 392192
        %v1038 = vsel %vm1037, %v1035, %v1019
        %v1039 = vsel %vm1037, %v1036, %v1021
        %vm1040 = vcmask 523264
        %v1041 = vsel %vm1040, %v1038, %v1027
        %v1042 = vsel %vm1040, %v1039, %v1029
        %v1043 = vld [vmem:[%s3] sm:$0xff]
        %v1044 = vld [vmem:[%s3 + $0x8] sm:$0xff]
        %v1045 = vld [vmem:[%s3 + $0x10] sm:$0xff]
        %v1046 = vld [vmem:[%s3 + $0x18] sm:$0xff]
        %v1047 = vld [vmem:[%s3 + $0x20] sm:$0xff]
        %v1048 = vld [vmem:[%s3 + $0x28] sm:$0xff]
        %v1049 = vld [vmem:[%s3 + $0x30] sm:$0xff]
        %v1050 = vld [vmem:[%s3 + $0x38] sm:$0xff]
        %v1051 = vld [vmem:[%s3 + $0x40] sm:$0xff]
        %v1052 = vld [vmem:[%s3 + $0x48] sm:$0xff]
        %v1053 = vld [vmem:[%s4] sm:$0x1]
        %v1055 = vperm.slane %v1053, 0
        %vm1057 = vcmask 654336
        %v1059 = vsel %vm1057, %v1041, 0
        %v1062 = vsel %vm1057, %v1042, 0
        %1064 = vmatpush.msra.mxu0 0.0
        %1065 = vmatpush.msra.mxu0 0.0
        %1066 = vmatpush.msra.mxu0 0.0
        %1067 = vmatpush.msra.mxu0 0.0
        %1068 = vmatpush.msra.mxu0 0.0
        %1069 = vmatpush.msra.mxu0 0.0
        %v1070 = vand.u32 %v1052, 4294901760
        %1071 = vmatpush.msra.mxu0 %v1070
        %v1072 = vand.u32 %v1051, 4294901760
        %1073 = vmatpush.msra.mxu0 %v1072
        %v1074 = vand.u32 %v1050, 4294901760
        %1075 = vmatpush.msra.mxu0 %v1074
        %v1076 = vand.u32 %v1049, 4294901760
        %1077 = vmatpush.msra.mxu0 %v1076
        %v1078 = vand.u32 %v1048, 4294901760
        %1079 = vmatpush.msra.mxu0 %v1078
        %v1080 = vand.u32 %v1047, 4294901760
        %1081 = vmatpush.msra.mxu0 %v1080
        %v1082 = vand.u32 %v1046, 4294901760
        %1083 = vmatpush.msra.mxu0 %v1082
        %v1084 = vand.u32 %v1045, 4294901760
        %1085 = vmatpush.msra.mxu0 %v1084
        %v1086 = vand.u32 %v1044, 4294901760
        %1087 = vmatpush.msra.mxu0 %v1086
        %v1088 = vand.u32 %v1043, 4294901760
        %1089 = vmatpush.msra.mxu0 %v1088
        %v1090 = vand.u32 %v1059, 4294901760
        %v1091 = vsub.f32 %v1059, %v1090
        %v1092 = vand.u32 %v1091, 4294901760
        %v1093 = vsub.f32 %v1091, %v1092
        %v1094 = vand.u32 %v1093, 4294901760
        %1095 = vmatmul.f32.gmra.mxu0 %v1094
        %v1096 = vpop.f32.mrf.mxu0
        %v1097 = vadd.f32 %v1055, %v1096
        %v1098 = vand.u32 %v1062, 4294901760
        %v1099 = vsub.f32 %v1062, %v1098
        %v1100 = vand.u32 %v1099, 4294901760
        %v1101 = vsub.f32 %v1099, %v1100
        %v1102 = vand.u32 %v1101, 4294901760
        %1103 = vmatmul.f32.gmra.mxu0 %v1102
        %v1104 = vpop.f32.mrf.mxu0
        %v1105 = vadd.f32 %v1055, %v1104
        %1106 = vdwg.mxu0
        %1107 = vmatpush.msra.mxu0 0.0
        %1108 = vmatpush.msra.mxu0 0.0
        %1109 = vmatpush.msra.mxu0 0.0
        %1110 = vmatpush.msra.mxu0 0.0
        %1111 = vmatpush.msra.mxu0 0.0
        %1112 = vmatpush.msra.mxu0 0.0
        %v1113 = vand.u32 %v1052, 4294901760
        %v1114 = vsub.f32 %v1052, %v1113
        %v1115 = vand.u32 %v1114, 4294901760
        %v1116 = vsub.f32 %v1114, %v1115
        %v1117 = vand.u32 %v1116, 4294901760
        %1118 = vmatpush.msra.mxu0 %v1117
        %v1119 = vand.u32 %v1051, 4294901760
        %v1120 = vsub.f32 %v1051, %v1119
        %v1121 = vand.u32 %v1120, 4294901760
        %v1122 = vsub.f32 %v1120, %v1121
        %v1123 = vand.u32 %v1122, 4294901760
        %1124 = vmatpush.msra.mxu0 %v1123
        %v1125 = vand.u32 %v1050, 4294901760
        %v1126 = vsub.f32 %v1050, %v1125
        %v1127 = vand.u32 %v1126, 4294901760
        %v1128 = vsub.f32 %v1126, %v1127
        %v1129 = vand.u32 %v1128, 4294901760
        %1130 = vmatpush.msra.mxu0 %v1129
        %v1131 = vand.u32 %v1049, 4294901760
        %v1132 = vsub.f32 %v1049, %v1131
        %v1133 = vand.u32 %v1132, 4294901760
        %v1134 = vsub.f32 %v1132, %v1133
        %v1135 = vand.u32 %v1134, 4294901760
        %1136 = vmatpush.msra.mxu0 %v1135
        %v1137 = vand.u32 %v1048, 4294901760
        %v1138 = vsub.f32 %v1048, %v1137
        %v1139 = vand.u32 %v1138, 4294901760
        %v1140 = vsub.f32 %v1138, %v1139
        %v1141 = vand.u32 %v1140, 4294901760
        %1142 = vmatpush.msra.mxu0 %v1141
        %v1143 = vand.u32 %v1047, 4294901760
        %v1144 = vsub.f32 %v1047, %v1143
        %v1145 = vand.u32 %v1144, 4294901760
        %v1146 = vsub.f32 %v1144, %v1145
        %v1147 = vand.u32 %v1146, 4294901760
        %1148 = vmatpush.msra.mxu0 %v1147
        %v1149 = vand.u32 %v1046, 4294901760
        %v1150 = vsub.f32 %v1046, %v1149
        %v1151 = vand.u32 %v1150, 4294901760
        %v1152 = vsub.f32 %v1150, %v1151
        %v1153 = vand.u32 %v1152, 4294901760
        %1154 = vmatpush.msra.mxu0 %v1153
        %v1155 = vand.u32 %v1045, 4294901760
        %v1156 = vsub.f32 %v1045, %v1155
        %v1157 = vand.u32 %v1156, 4294901760
        %v1158 = vsub.f32 %v1156, %v1157
        %v1159 = vand.u32 %v1158, 4294901760
        %1160 = vmatpush.msra.mxu0 %v1159
        %v1161 = vand.u32 %v1044, 4294901760
        %v1162 = vsub.f32 %v1044, %v1161
        %v1163 = vand.u32 %v1162, 4294901760
        %v1164 = vsub.f32 %v1162, %v1163
        %v1165 = vand.u32 %v1164, 4294901760
        %1166 = vmatpush.msra.mxu0 %v1165
        %v1167 = vand.u32 %v1043, 4294901760
        %v1168 = vsub.f32 %v1043, %v1167
        %v1169 = vand.u32 %v1168, 4294901760
        %v1170 = vsub.f32 %v1168, %v1169
        %v1171 = vand.u32 %v1170, 4294901760
        %1172 = vmatpush.msra.mxu0 %v1171
        %v1173 = vand.u32 %v1059, 4294901760
        %1174 = vmatmul.f32.gmra.mxu0 %v1173
        %v1175 = vpop.f32.mrf.mxu0
        %v1176 = vadd.f32 %v1097, %v1175
        %v1177 = vand.u32 %v1062, 4294901760
        %1178 = vmatmul.f32.gmra.mxu0 %v1177
        %v1179 = vpop.f32.mrf.mxu0
        %v1180 = vadd.f32 %v1105, %v1179
        %1181 = vdwg.mxu0
        %1182 = vmatpush.msra.mxu0 0.0
        %1183 = vmatpush.msra.mxu0 0.0
        %1184 = vmatpush.msra.mxu0 0.0
        %1185 = vmatpush.msra.mxu0 0.0
        %1186 = vmatpush.msra.mxu0 0.0
        %1187 = vmatpush.msra.mxu0 0.0
        %v1188 = vand.u32 %v1052, 4294901760
        %v1189 = vsub.f32 %v1052, %v1188
        %1190 = vmatpush.msra.mxu0 %v1189
        %v1191 = vand.u32 %v1051, 4294901760
        %v1192 = vsub.f32 %v1051, %v1191
        %1193 = vmatpush.msra.mxu0 %v1192
        %v1194 = vand.u32 %v1050, 4294901760
        %v1195 = vsub.f32 %v1050, %v1194
        %1196 = vmatpush.msra.mxu0 %v1195
        %v1197 = vand.u32 %v1049, 4294901760
        %v1198 = vsub.f32 %v1049, %v1197
        %1199 = vmatpush.msra.mxu0 %v1198
        %v1200 = vand.u32 %v1048, 4294901760
        %v1201 = vsub.f32 %v1048, %v1200
        %1202 = vmatpush.msra.mxu0 %v1201
        %v1203 = vand.u32 %v1047, 4294901760
        %v1204 = vsub.f32 %v1047, %v1203
        %1205 = vmatpush.msra.mxu0 %v1204
        %v1206 = vand.u32 %v1046, 4294901760
        %v1207 = vsub.f32 %v1046, %v1206
        %1208 = vmatpush.msra.mxu0 %v1207
        %v1209 = vand.u32 %v1045, 4294901760
        %v1210 = vsub.f32 %v1045, %v1209
        %1211 = vmatpush.msra.mxu0 %v1210
        %v1212 = vand.u32 %v1044, 4294901760
        %v1213 = vsub.f32 %v1044, %v1212
        %1214 = vmatpush.msra.mxu0 %v1213
        %v1215 = vand.u32 %v1043, 4294901760
        %v1216 = vsub.f32 %v1043, %v1215
        %1217 = vmatpush.msra.mxu0 %v1216
        %v1218 = vand.u32 %v1059, 4294901760
        %v1219 = vsub.f32 %v1059, %v1218
        %1220 = vmatmul.f32.gmra.mxu0 %v1219
        %v1221 = vpop.f32.mrf.mxu0
        %v1222 = vadd.f32 %v1176, %v1221
        %v1223 = vand.u32 %v1062, 4294901760
        %v1224 = vsub.f32 %v1062, %v1223
        %1225 = vmatmul.f32.gmra.mxu0 %v1224
        %v1226 = vpop.f32.mrf.mxu0
        %v1227 = vadd.f32 %v1180, %v1226
        %1228 = vdwg.mxu0
        %1229 = vmatpush.msra.mxu0 0.0
        %1230 = vmatpush.msra.mxu0 0.0
        %1231 = vmatpush.msra.mxu0 0.0
        %1232 = vmatpush.msra.mxu0 0.0
        %1233 = vmatpush.msra.mxu0 0.0
        %1234 = vmatpush.msra.mxu0 0.0
        %v1235 = vand.u32 %v1052, 4294901760
        %1236 = vmatpush.msra.mxu0 %v1235
        %v1237 = vand.u32 %v1051, 4294901760
        %1238 = vmatpush.msra.mxu0 %v1237
        %v1239 = vand.u32 %v1050, 4294901760
        %1240 = vmatpush.msra.mxu0 %v1239
        %v1241 = vand.u32 %v1049, 4294901760
        %1242 = vmatpush.msra.mxu0 %v1241
        %v1243 = vand.u32 %v1048, 4294901760
        %1244 = vmatpush.msra.mxu0 %v1243
        %v1245 = vand.u32 %v1047, 4294901760
        %1246 = vmatpush.msra.mxu0 %v1245
        %v1247 = vand.u32 %v1046, 4294901760
        %1248 = vmatpush.msra.mxu0 %v1247
        %v1249 = vand.u32 %v1045, 4294901760
        %1250 = vmatpush.msra.mxu0 %v1249
        %v1251 = vand.u32 %v1044, 4294901760
        %1252 = vmatpush.msra.mxu0 %v1251
        %v1253 = vand.u32 %v1043, 4294901760
        %1254 = vmatpush.msra.mxu0 %v1253
        %v1255 = vand.u32 %v1059, 4294901760
        %v1256 = vsub.f32 %v1059, %v1255
        %v1257 = vand.u32 %v1256, 4294901760
        %1258 = vmatmul.f32.gmra.mxu0 %v1257
        %v1259 = vpop.f32.mrf.mxu0
        %v1260 = vadd.f32 %v1222, %v1259
        %v1261 = vand.u32 %v1062, 4294901760
        %v1262 = vsub.f32 %v1062, %v1261
        %v1263 = vand.u32 %v1262, 4294901760
        %1264 = vmatmul.f32.gmra.mxu0 %v1263
        %v1265 = vpop.f32.mrf.mxu0
        %v1266 = vadd.f32 %v1227, %v1265
        %1267 = vdwg.mxu0
        %1268 = vmatpush.msra.mxu0 0.0
        %1269 = vmatpush.msra.mxu0 0.0
        %1270 = vmatpush.msra.mxu0 0.0
        %1271 = vmatpush.msra.mxu0 0.0
        %1272 = vmatpush.msra.mxu0 0.0
        %1273 = vmatpush.msra.mxu0 0.0
        %v1274 = vand.u32 %v1052, 4294901760
        %v1275 = vsub.f32 %v1052, %v1274
        %v1276 = vand.u32 %v1275, 4294901760
        %1277 = vmatpush.msra.mxu0 %v1276
        %v1278 = vand.u32 %v1051, 4294901760
        %v1279 = vsub.f32 %v1051, %v1278
        %v1280 = vand.u32 %v1279, 4294901760
        %1281 = vmatpush.msra.mxu0 %v1280
        %v1282 = vand.u32 %v1050, 4294901760
        %v1283 = vsub.f32 %v1050, %v1282
        %v1284 = vand.u32 %v1283, 4294901760
        %1285 = vmatpush.msra.mxu0 %v1284
        %v1286 = vand.u32 %v1049, 4294901760
        %v1287 = vsub.f32 %v1049, %v1286
        %v1288 = vand.u32 %v1287, 4294901760
        %1289 = vmatpush.msra.mxu0 %v1288
        %v1290 = vand.u32 %v1048, 4294901760
        %v1291 = vsub.f32 %v1048, %v1290
        %v1292 = vand.u32 %v1291, 4294901760
        %1293 = vmatpush.msra.mxu0 %v1292
        %v1294 = vand.u32 %v1047, 4294901760
        %v1295 = vsub.f32 %v1047, %v1294
        %v1296 = vand.u32 %v1295, 4294901760
        %1297 = vmatpush.msra.mxu0 %v1296
        %v1298 = vand.u32 %v1046, 4294901760
        %v1299 = vsub.f32 %v1046, %v1298
        %v1300 = vand.u32 %v1299, 4294901760
        %1301 = vmatpush.msra.mxu0 %v1300
        %v1302 = vand.u32 %v1045, 4294901760
        %v1303 = vsub.f32 %v1045, %v1302
        %v1304 = vand.u32 %v1303, 4294901760
        %1305 = vmatpush.msra.mxu0 %v1304
        %v1306 = vand.u32 %v1044, 4294901760
        %v1307 = vsub.f32 %v1044, %v1306
        %v1308 = vand.u32 %v1307, 4294901760
        %1309 = vmatpush.msra.mxu0 %v1308
        %v1310 = vand.u32 %v1043, 4294901760
        %v1311 = vsub.f32 %v1043, %v1310
        %v1312 = vand.u32 %v1311, 4294901760
        %1313 = vmatpush.msra.mxu0 %v1312
        %v1314 = vand.u32 %v1059, 4294901760
        %1315 = vmatmul.f32.gmra.mxu0 %v1314
        %v1316 = vpop.f32.mrf.mxu0
        %v1317 = vadd.f32 %v1260, %v1316
        %v1318 = vand.u32 %v1062, 4294901760
        %1319 = vmatmul.f32.gmra.mxu0 %v1318
        %v1320 = vpop.f32.mrf.mxu0
        %v1321 = vadd.f32 %v1266, %v1320
        %1322 = vdwg.mxu0
        %1323 = vmatpush.msra.mxu0 0.0
        %1324 = vmatpush.msra.mxu0 0.0
        %1325 = vmatpush.msra.mxu0 0.0
        %1326 = vmatpush.msra.mxu0 0.0
        %1327 = vmatpush.msra.mxu0 0.0
        %1328 = vmatpush.msra.mxu0 0.0
        %v1329 = vand.u32 %v1052, 4294901760
        %1330 = vmatpush.msra.mxu0 %v1329
        %v1331 = vand.u32 %v1051, 4294901760
        %1332 = vmatpush.msra.mxu0 %v1331
        %v1333 = vand.u32 %v1050, 4294901760
        %1334 = vmatpush.msra.mxu0 %v1333
        %v1335 = vand.u32 %v1049, 4294901760
        %1336 = vmatpush.msra.mxu0 %v1335
        %v1337 = vand.u32 %v1048, 4294901760
        %1338 = vmatpush.msra.mxu0 %v1337
        %v1339 = vand.u32 %v1047, 4294901760
        %1340 = vmatpush.msra.mxu0 %v1339
        %v1341 = vand.u32 %v1046, 4294901760
        %1342 = vmatpush.msra.mxu0 %v1341
        %v1343 = vand.u32 %v1045, 4294901760
        %1344 = vmatpush.msra.mxu0 %v1343
        %v1345 = vand.u32 %v1044, 4294901760
        %1346 = vmatpush.msra.mxu0 %v1345
        %v1347 = vand.u32 %v1043, 4294901760
        %1348 = vmatpush.msra.mxu0 %v1347
        %v1349 = vand.u32 %v1059, 4294901760
        %1350 = vmatmul.f32.gmra.mxu0 %v1349
        %v1351 = vpop.f32.mrf.mxu0
        %v1352 = vadd.f32 %v1317, %v1351
        %v1353 = vand.u32 %v1062, 4294901760
        %1354 = vmatmul.f32.gmra.mxu0 %v1353
        %v1355 = vpop.f32.mrf.mxu0
        %v1356 = vadd.f32 %v1321, %v1355
        %1357 = vdwg.mxu0
        %v1358 = vmax.f32 %v1352, 0.0
        %v1359 = vmax.f32 %v1356, 0.0
        %s1360 = scalar_lea.vmem [#allocation2], 5
        %v1361 = vld [vmem:[%s1360] ss:$2 sm:$0xff]
        %s1362 = scalar_lea.vmem [#allocation2], 21
        %v1363 = vld [vmem:[%s1362] ss:$2 sm:$0xff]
        %1364 = vrot.lane.b32.xlu0 %v989, 16
        %v1365 = vpop.permute.xlu0 %1364
        %1366 = vrot.lane.b32.xlu0 %v991, 16
        %v1367 = vpop.permute.xlu0 %1366
        %1370 = vrot.lane.b32.xlu0 %v993, 32
        %v1371 = vpop.permute.xlu0 %1370
        %1372 = vrot.lane.b32.xlu0 %v995, 32
        %v1373 = vpop.permute.xlu0 %1372
        %1376 = vrot.lane.b32.xlu0 %v997, 48
        %v1377 = vpop.permute.xlu0 %1376
        %1378 = vrot.lane.b32.xlu0 %v999, 48
        %v1379 = vpop.permute.xlu0 %1378
        %1384 = vrot.lane.b32.xlu0 %v1361, 64
        %v1385 = vpop.permute.xlu0 %1384
        %1386 = vrot.lane.b32.xlu0 %v1363, 64
        %v1387 = vpop.permute.xlu0 %1386
        %v1390 = vsel %vm976, %v985, %v1365
        %v1391 = vsel %vm976, %v987, %v1367
        %v1392 = vsel %vm1034, %v1390, %v1371
        %v1393 = vsel %vm1034, %v1391, %v1373
        %v1394 = vsel %vm1037, %v1392, %v1377
        %v1395 = vsel %vm1037, %v1393, %v1379
        %v1396 = vsel %vm1040, %v1394, %v1385
        %v1397 = vsel %vm1040, %v1395, %v1387
        %v1399 = vsel %vm1057, %v1396, 0
        %v1402 = vsel %vm1057, %v1397, 0
        %1404 = vmatpush.msra.mxu0 0.0
        %1405 = vmatpush.msra.mxu0 0.0
        %1406 = vmatpush.msra.mxu0 0.0
        %1407 = vmatpush.msra.mxu0 0.0
        %1408 = vmatpush.msra.mxu0 0.0
        %1409 = vmatpush.msra.mxu0 0.0
        %v1410 = vand.u32 %v1052, 4294901760
        %1411 = vmatpush.msra.mxu0 %v1410
        %v1412 = vand.u32 %v1051, 4294901760
        %1413 = vmatpush.msra.mxu0 %v1412
        %v1414 = vand.u32 %v1050, 4294901760
        %1415 = vmatpush.msra.mxu0 %v1414
        %v1416 = vand.u32 %v1049, 4294901760
        %1417 = vmatpush.msra.mxu0 %v1416
        %v1418 = vand.u32 %v1048, 4294901760
        %1419 = vmatpush.msra.mxu0 %v1418
        %v1420 = vand.u32 %v1047, 4294901760
        %1421 = vmatpush.msra.mxu0 %v1420
        %v1422 = vand.u32 %v1046, 4294901760
        %1423 = vmatpush.msra.mxu0 %v1422
        %v1424 = vand.u32 %v1045, 4294901760
        %1425 = vmatpush.msra.mxu0 %v1424
        %v1426 = vand.u32 %v1044, 4294901760
        %1427 = vmatpush.msra.mxu0 %v1426
        %v1428 = vand.u32 %v1043, 4294901760
        %1429 = vmatpush.msra.mxu0 %v1428
        %v1430 = vand.u32 %v1399, 4294901760
        %v1431 = vsub.f32 %v1399, %v1430
        %v1432 = vand.u32 %v1431, 4294901760
        %v1433 = vsub.f32 %v1431, %v1432
        %v1434 = vand.u32 %v1433, 4294901760
        %1435 = vmatmul.f32.gmra.mxu0 %v1434
        %v1436 = vpop.f32.mrf.mxu0
        %v1437 = vadd.f32 %v1055, %v1436
        %v1438 = vand.u32 %v1402, 4294901760
        %v1439 = vsub.f32 %v1402, %v1438
        %v1440 = vand.u32 %v1439, 4294901760
        %v1441 = vsub.f32 %v1439, %v1440
        %v1442 = vand.u32 %v1441, 4294901760
        %1443 = vmatmul.f32.gmra.mxu0 %v1442
        %v1444 = vpop.f32.mrf.mxu0
        %v1445 = vadd.f32 %v1055, %v1444
        %1446 = vdwg.mxu0
        %1447 = vmatpush.msra.mxu0 0.0
        %1448 = vmatpush.msra.mxu0 0.0
        %1449 = vmatpush.msra.mxu0 0.0
        %1450 = vmatpush.msra.mxu0 0.0
        %1451 = vmatpush.msra.mxu0 0.0
        %1452 = vmatpush.msra.mxu0 0.0
        %v1453 = vand.u32 %v1052, 4294901760
        %v1454 = vsub.f32 %v1052, %v1453
        %v1455 = vand.u32 %v1454, 4294901760
        %v1456 = vsub.f32 %v1454, %v1455
        %v1457 = vand.u32 %v1456, 4294901760
        %1458 = vmatpush.msra.mxu0 %v1457
        %v1459 = vand.u32 %v1051, 4294901760
        %v1460 = vsub.f32 %v1051, %v1459
        %v1461 = vand.u32 %v1460, 4294901760
        %v1462 = vsub.f32 %v1460, %v1461
        %v1463 = vand.u32 %v1462, 4294901760
        %1464 = vmatpush.msra.mxu0 %v1463
        %v1465 = vand.u32 %v1050, 4294901760
        %v1466 = vsub.f32 %v1050, %v1465
        %v1467 = vand.u32 %v1466, 4294901760
        %v1468 = vsub.f32 %v1466, %v1467
        %v1469 = vand.u32 %v1468, 4294901760
        %1470 = vmatpush.msra.mxu0 %v1469
        %v1471 = vand.u32 %v1049, 4294901760
        %v1472 = vsub.f32 %v1049, %v1471
        %v1473 = vand.u32 %v1472, 4294901760
        %v1474 = vsub.f32 %v1472, %v1473
        %v1475 = vand.u32 %v1474, 4294901760
        %1476 = vmatpush.msra.mxu0 %v1475
        %v1477 = vand.u32 %v1048, 4294901760
        %v1478 = vsub.f32 %v1048, %v1477
        %v1479 = vand.u32 %v1478, 4294901760
        %v1480 = vsub.f32 %v1478, %v1479
        %v1481 = vand.u32 %v1480, 4294901760
        %1482 = vmatpush.msra.mxu0 %v1481
        %v1483 = vand.u32 %v1047, 4294901760
        %v1484 = vsub.f32 %v1047, %v1483
        %v1485 = vand.u32 %v1484, 4294901760
        %v1486 = vsub.f32 %v1484, %v1485
        %v1487 = vand.u32 %v1486, 4294901760
        %1488 = vmatpush.msra.mxu0 %v1487
        %v1489 = vand.u32 %v1046, 4294901760
        %v1490 = vsub.f32 %v1046, %v1489
        %v1491 = vand.u32 %v1490, 4294901760
        %v1492 = vsub.f32 %v1490, %v1491
        %v1493 = vand.u32 %v1492, 4294901760
        %1494 = vmatpush.msra.mxu0 %v1493
        %v1495 = vand.u32 %v1045, 4294901760
        %v1496 = vsub.f32 %v1045, %v1495
        %v1497 = vand.u32 %v1496, 4294901760
        %v1498 = vsub.f32 %v1496, %v1497
        %v1499 = vand.u32 %v1498, 4294901760
        %1500 = vmatpush.msra.mxu0 %v1499
        %v1501 = vand.u32 %v1044, 4294901760
        %v1502 = vsub.f32 %v1044, %v1501
        %v1503 = vand.u32 %v1502, 4294901760
        %v1504 = vsub.f32 %v1502, %v1503
        %v1505 = vand.u32 %v1504, 4294901760
        %1506 = vmatpush.msra.mxu0 %v1505
        %v1507 = vand.u32 %v1043, 4294901760
        %v1508 = vsub.f32 %v1043, %v1507
        %v1509 = vand.u32 %v1508, 4294901760
        %v1510 = vsub.f32 %v1508, %v1509
        %v1511 = vand.u32 %v1510, 4294901760
        %1512 = vmatpush.msra.mxu0 %v1511
        %v1513 = vand.u32 %v1399, 4294901760
        %1514 = vmatmul.f32.gmra.mxu0 %v1513
        %v1515 = vpop.f32.mrf.mxu0
        %v1516 = vadd.f32 %v1437, %v1515
        %v1517 = vand.u32 %v1402, 4294901760
        %1518 = vmatmul.f32.gmra.mxu0 %v1517
        %v1519 = vpop.f32.mrf.mxu0
        %v1520 = vadd.f32 %v1445, %v1519
        %1521 = vdwg.mxu0
        %1522 = vmatpush.msra.mxu0 0.0
        %1523 = vmatpush.msra.mxu0 0.0
        %1524 = vmatpush.msra.mxu0 0.0
        %1525 = vmatpush.msra.mxu0 0.0
        %1526 = vmatpush.msra.mxu0 0.0
        %1527 = vmatpush.msra.mxu0 0.0
        %v1528 = vand.u32 %v1052, 4294901760
        %v1529 = vsub.f32 %v1052, %v1528
        %1530 = vmatpush.msra.mxu0 %v1529
        %v1531 = vand.u32 %v1051, 4294901760
        %v1532 = vsub.f32 %v1051, %v1531
        %1533 = vmatpush.msra.mxu0 %v1532
        %v1534 = vand.u32 %v1050, 4294901760
        %v1535 = vsub.f32 %v1050, %v1534
        %1536 = vmatpush.msra.mxu0 %v1535
        %v1537 = vand.u32 %v1049, 4294901760
        %v1538 = vsub.f32 %v1049, %v1537
        %1539 = vmatpush.msra.mxu0 %v1538
        %v1540 = vand.u32 %v1048, 4294901760
        %v1541 = vsub.f32 %v1048, %v1540
        %1542 = vmatpush.msra.mxu0 %v1541
        %v1543 = vand.u32 %v1047, 4294901760
        %v1544 = vsub.f32 %v1047, %v1543
        %1545 = vmatpush.msra.mxu0 %v1544
        %v1546 = vand.u32 %v1046, 4294901760
        %v1547 = vsub.f32 %v1046, %v1546
        %1548 = vmatpush.msra.mxu0 %v1547
        %v1549 = vand.u32 %v1045, 4294901760
        %v1550 = vsub.f32 %v1045, %v1549
        %1551 = vmatpush.msra.mxu0 %v1550
        %v1552 = vand.u32 %v1044, 4294901760
        %v1553 = vsub.f32 %v1044, %v1552
        %1554 = vmatpush.msra.mxu0 %v1553
        %v1555 = vand.u32 %v1043, 4294901760
        %v1556 = vsub.f32 %v1043, %v1555
        %1557 = vmatpush.msra.mxu0 %v1556
        %v1558 = vand.u32 %v1399, 4294901760
        %v1559 = vsub.f32 %v1399, %v1558
        %1560 = vmatmul.f32.gmra.mxu0 %v1559
        %v1561 = vpop.f32.mrf.mxu0
        %v1562 = vadd.f32 %v1516, %v1561
        %v1563 = vand.u32 %v1402, 4294901760
        %v1564 = vsub.f32 %v1402, %v1563
        %1565 = vmatmul.f32.gmra.mxu0 %v1564
        %v1566 = vpop.f32.mrf.mxu0
        %v1567 = vadd.f32 %v1520, %v1566
        %1568 = vdwg.mxu0
        %1569 = vmatpush.msra.mxu0 0.0
        %1570 = vmatpush.msra.mxu0 0.0
        %1571 = vmatpush.msra.mxu0 0.0
        %1572 = vmatpush.msra.mxu0 0.0
        %1573 = vmatpush.msra.mxu0 0.0
        %1574 = vmatpush.msra.mxu0 0.0
        %v1575 = vand.u32 %v1052, 4294901760
        %1576 = vmatpush.msra.mxu0 %v1575
        %v1577 = vand.u32 %v1051, 4294901760
        %1578 = vmatpush.msra.mxu0 %v1577
        %v1579 = vand.u32 %v1050, 4294901760
        %1580 = vmatpush.msra.mxu0 %v1579
        %v1581 = vand.u32 %v1049, 4294901760
        %1582 = vmatpush.msra.mxu0 %v1581
        %v1583 = vand.u32 %v1048, 4294901760
        %1584 = vmatpush.msra.mxu0 %v1583
        %v1585 = vand.u32 %v1047, 4294901760
        %1586 = vmatpush.msra.mxu0 %v1585
        %v1587 = vand.u32 %v1046, 4294901760
        %1588 = vmatpush.msra.mxu0 %v1587
        %v1589 = vand.u32 %v1045, 4294901760
        %1590 = vmatpush.msra.mxu0 %v1589
        %v1591 = vand.u32 %v1044, 4294901760
        %1592 = vmatpush.msra.mxu0 %v1591
        %v1593 = vand.u32 %v1043, 4294901760
        %1594 = vmatpush.msra.mxu0 %v1593
        %v1595 = vand.u32 %v1399, 4294901760
        %v1596 = vsub.f32 %v1399, %v1595
        %v1597 = vand.u32 %v1596, 4294901760
        %1598 = vmatmul.f32.gmra.mxu0 %v1597
        %v1599 = vpop.f32.mrf.mxu0
        %v1600 = vadd.f32 %v1562, %v1599
        %v1601 = vand.u32 %v1402, 4294901760
        %v1602 = vsub.f32 %v1402, %v1601
        %v1603 = vand.u32 %v1602, 4294901760
        %1604 = vmatmul.f32.gmra.mxu0 %v1603
        %v1605 = vpop.f32.mrf.mxu0
        %v1606 = vadd.f32 %v1567, %v1605
        %1607 = vdwg.mxu0
        %1608 = vmatpush.msra.mxu0 0.0
        %1609 = vmatpush.msra.mxu0 0.0
        %1610 = vmatpush.msra.mxu0 0.0
        %1611 = vmatpush.msra.mxu0 0.0
        %1612 = vmatpush.msra.mxu0 0.0
        %1613 = vmatpush.msra.mxu0 0.0
        %v1614 = vand.u32 %v1052, 4294901760
        %v1615 = vsub.f32 %v1052, %v1614
        %v1616 = vand.u32 %v1615, 4294901760
        %1617 = vmatpush.msra.mxu0 %v1616
        %v1618 = vand.u32 %v1051, 4294901760
        %v1619 = vsub.f32 %v1051, %v1618
        %v1620 = vand.u32 %v1619, 4294901760
        %1621 = vmatpush.msra.mxu0 %v1620
        %v1622 = vand.u32 %v1050, 4294901760
        %v1623 = vsub.f32 %v1050, %v1622
        %v1624 = vand.u32 %v1623, 4294901760
        %1625 = vmatpush.msra.mxu0 %v1624
        %v1626 = vand.u32 %v1049, 4294901760
        %v1627 = vsub.f32 %v1049, %v1626
        %v1628 = vand.u32 %v1627, 4294901760
        %1629 = vmatpush.msra.mxu0 %v1628
        %v1630 = vand.u32 %v1048, 4294901760
        %v1631 = vsub.f32 %v1048, %v1630
        %v1632 = vand.u32 %v1631, 4294901760
        %1633 = vmatpush.msra.mxu0 %v1632
        %v1634 = vand.u32 %v1047, 4294901760
        %v1635 = vsub.f32 %v1047, %v1634
        %v1636 = vand.u32 %v1635, 4294901760
        %1637 = vmatpush.msra.mxu0 %v1636
        %v1638 = vand.u32 %v1046, 4294901760
        %v1639 = vsub.f32 %v1046, %v1638
        %v1640 = vand.u32 %v1639, 4294901760
        %1641 = vmatpush.msra.mxu0 %v1640
        %v1642 = vand.u32 %v1045, 4294901760
        %v1643 = vsub.f32 %v1045, %v1642
        %v1644 = vand.u32 %v1643, 4294901760
        %1645 = vmatpush.msra.mxu0 %v1644
        %v1646 = vand.u32 %v1044, 4294901760
        %v1647 = vsub.f32 %v1044, %v1646
        %v1648 = vand.u32 %v1647, 4294901760
        %1649 = vmatpush.msra.mxu0 %v1648
        %v1650 = vand.u32 %v1043, 4294901760
        %v1651 = vsub.f32 %v1043, %v1650
        %v1652 = vand.u32 %v1651, 4294901760
        %1653 = vmatpush.msra.mxu0 %v1652
        %v1654 = vand.u32 %v1399, 4294901760
        %1655 = vmatmul.f32.gmra.mxu0 %v1654
        %v1656 = vpop.f32.mrf.mxu0
        %v1657 = vadd.f32 %v1600, %v1656
        %v1658 = vand.u32 %v1402, 4294901760
        %1659 = vmatmul.f32.gmra.mxu0 %v1658
        %v1660 = vpop.f32.mrf.mxu0
        %v1661 = vadd.f32 %v1606, %v1660
        %1662 = vdwg.mxu0
        %1663 = vmatpush.msra.mxu0 0.0
        %1664 = vmatpush.msra.mxu0 0.0
        %1665 = vmatpush.msra.mxu0 0.0
        %1666 = vmatpush.msra.mxu0 0.0
        %1667 = vmatpush.msra.mxu0 0.0
        %1668 = vmatpush.msra.mxu0 0.0
        %v1669 = vand.u32 %v1052, 4294901760
        %1670 = vmatpush.msra.mxu0 %v1669
        %v1671 = vand.u32 %v1051, 4294901760
        %1672 = vmatpush.msra.mxu0 %v1671
        %v1673 = vand.u32 %v1050, 4294901760
        %1674 = vmatpush.msra.mxu0 %v1673
        %v1675 = vand.u32 %v1049, 4294901760
        %1676 = vmatpush.msra.mxu0 %v1675
        %v1677 = vand.u32 %v1048, 4294901760
        %1678 = vmatpush.msra.mxu0 %v1677
        %v1679 = vand.u32 %v1047, 4294901760
        %1680 = vmatpush.msra.mxu0 %v1679
        %v1681 = vand.u32 %v1046, 4294901760
        %1682 = vmatpush.msra.mxu0 %v1681
        %v1683 = vand.u32 %v1045, 4294901760
        %1684 = vmatpush.msra.mxu0 %v1683
        %v1685 = vand.u32 %v1044, 4294901760
        %1686 = vmatpush.msra.mxu0 %v1685
        %v1687 = vand.u32 %v1043, 4294901760
        %1688 = vmatpush.msra.mxu0 %v1687
        %v1689 = vand.u32 %v1399, 4294901760
        %1690 = vmatmul.f32.gmra.mxu0 %v1689
        %v1691 = vpop.f32.mrf.mxu0
        %v1692 = vadd.f32 %v1657, %v1691
        %v1693 = vand.u32 %v1402, 4294901760
        %1694 = vmatmul.f32.gmra.mxu0 %v1693
        %v1695 = vpop.f32.mrf.mxu0
        %v1696 = vadd.f32 %v1661, %v1695
        %1697 = vdwg.mxu0
        %v1698 = vmax.f32 %v1692, 0.0
        %v1699 = vmax.f32 %v1696, 0.0
        %v1700 = vmax.f32 %v1358, %v1698
        %v1701 = vmax.f32 %v1359, %v1699
        %v1702 = vld [vmem:[%s5] sm:$0xff]
        %v1703 = vld [vmem:[%s5 + $0x8] sm:$0xff]
        %v1704 = vadd.f32 %v1700, %v1702
        %v1705 = vadd.f32 %v1701, %v1703
        %1706 = vst.msk [vmem:[%s244] sm:$0xff] %vm1034, %v1704
        %1707 = vst.msk [vmem:[%s244 + $0x8] sm:$0xff] %vm1034, %v1705
        %s1708 = sand.u32 %s159, 1
        %s1709 = scalar_lea.sflag [#allocation4], %s1708
        %s1710 = sand.u32 %s159, 1
        %s1711 = smul.addr %s1710, 16
        %s1712 = scalar_lea.vmem [#allocation3], %s1711
        // Predicated region
        $region45: #{tpu_custom_call.1} parent=43 // pred_check
          %p1713 = pneg %p169
        $region46: #{tpu_custom_call.1} parent=43 // pred_check_branch
          %1715 = sbr.rel (%p1713) target = $region48
        $region47: #{tpu_custom_call.1} parent=43 // pred_region
          %1717 = vsyncadd %s1709, 0
          %s1718 = smul.addr %s20, 2
          %s1719 = smul.addr %s1718, 8
          %s1720 = scalar_lea.hbm %s6, %s1719
          %s1721 = sshll.u32 %s1712, 4
          %s1722 = int_to_ptr.vmem [resolvable:$true] %s1721
          %s1723 = sshll.u32 %s1720, 4
          %s1724 = int_to_ptr.hbm [resolvable:$true] %s1723
          %1729 = dma.vmem_to_hbm [thread:$0]  %s1722, 256, %s1724, %s1709, 128, 128, 8
        $region48: #{tpu_custom_call.1} parent=43 // pred_fallthru
          _
      $region44: #{tpu_custom_call.1} parent=5 // pred_fallthru
        _
      %p1730 = scmp.le.s32.totalorder 2, %s15
      // Predicated region
      $region49: #{tpu_custom_call.1} parent=5 // pred_check
        %p1731 = pneg %p1730
      $region50: #{tpu_custom_call.1} parent=5 // pred_check_branch
        %1733 = sbr.rel (%p1731) target = $region52
      $region51: #{tpu_custom_call.1} parent=5 // pred_region
        %s1734 = ssub.s32 %s15, 2
        // Predicated region
        $region53: #{tpu_custom_call.1} parent=51 // pred_check
          %p1735 = pneg %p175
        $region54: #{tpu_custom_call.1} parent=51 // pred_check_branch
          %1737 = sbr.rel (%p1735) target = $region56
        $region55: #{tpu_custom_call.1} parent=51 // pred_region
          %s1738 = sand.u32 %s160, 1
          %s1739 = scalar_lea.sflag [#allocation4], %s1738
          %s1740 = sand.u32 %s160, 1
          %s1741 = smul.addr %s1740, 16
          %s1742 = scalar_lea.vmem [#allocation3], %s1741
          %1744 = dma.done %s1739, 256
        $region56: #{tpu_custom_call.1} parent=51 // pred_fallthru
          _
      $region52: #{tpu_custom_call.1} parent=5 // pred_fallthru
        _
    $region6: #{tpu_custom_call.1} parent=1 // loop_footer
      %s19 = sadd.s32 1, %s15
    $region7: #{tpu_custom_call.1} parent=1 // loop_footer_branch
      %14 = sbr.rel target = $region3
    $region8: #{tpu_custom_call.1} parent=1 // loop_exit
      _
    %1745 = vsyncpa [#allocation4], 1
    %s1746 = scalar_lea.sflag [#allocation4], 1
    %1747 = vsyncpa %s1746, 1

</llo_original>
